<compile_context>
chip_gen: v7x
topology: tpu7x:2x2x1
jax: 0.10.0
libtpu: 0.0.40
codegen_flags: <defaults>
</compile_context>

<pallas_src>
import functools

import jax
import jax.numpy as jnp
from jax.experimental import pallas as pl
from jax.experimental.pallas import tpu as pltpu

# Explicit scoped-VMEM limit: above the v5e (16 MiB) / v6e-v7x (32 MiB) defaults,
# below v7x's 64 MiB physical VMEM.
VMEM_LIMIT_BYTES = 48 * 1024 * 1024


def _round_up(x, m):
    return ((x + m - 1) // m) * m


# ---------------------------------------------------------------------------
# Generic parallel tiled matmul + bias kernel (used for the input projection)
# ---------------------------------------------------------------------------
def _matmul_bias_kernel(x_ref, w_ref, b_ref, o_ref, acc_ref, *, operand_dtype):
    k = pl.program_id(2)

    @pl.when(k == 0)
    def _():
        acc_ref[...] = jnp.zeros_like(acc_ref)

    x = x_ref[...]
    w = w_ref[...]
    if operand_dtype is not None:            # optional bf16 operands, f32 accumulation
        x = x.astype(operand_dtype)
        w = w.astype(operand_dtype)
    acc_ref[...] += jnp.dot(x, w, preferred_element_type=jnp.float32)

    @pl.when(k == pl.num_programs(2) - 1)
    def _():
        o_ref[...] = (acc_ref[...] + b_ref[...]).astype(o_ref.dtype)


def matmul_bias(x, w, b, *, tm=256, tn=256, tk=256, operand_dtype=None):
    """y = x @ w + b with a parallel-grid Pallas kernel.  x:(M,K) w:(K,N) b:(1,N)."""
    M, K = x.shape
    _, N = w.shape

    tm = min(tm, _round_up(M, 8))
    tn = min(tn, _round_up(N, 128))
    tk = min(tk, _round_up(K, 128))
    Mp, Np, Kp = _round_up(M, tm), _round_up(N, tn), _round_up(K, tk)

    x_p = jnp.pad(x, ((0, Mp - M), (0, Kp - K))) if (Mp != M or Kp != K) else x
    w_p = jnp.pad(w, ((0, Kp - K), (0, Np - N))) if (Kp != K or Np != N) else w
    b_p = jnp.pad(b, ((0, 0), (0, Np - N))) if Np != N else b

    out = pl.pallas_call(
        functools.partial(_matmul_bias_kernel, operand_dtype=operand_dtype),
        out_shape=jax.ShapeDtypeStruct((Mp, Np), jnp.float32),
        grid=(Mp // tm, Np // tn, Kp // tk),
        in_specs=[
            pl.BlockSpec((tm, tk), lambda i, j, k: (i, k)),
            pl.BlockSpec((tk, tn), lambda i, j, k: (k, j)),
            pl.BlockSpec((1, tn), lambda i, j, k: (0, j)),
        ],
        out_specs=pl.BlockSpec((tm, tn), lambda i, j, k: (i, j)),
        scratch_shapes=[pltpu.VMEM((tm, tn), jnp.float32)],
        compiler_params=pltpu.CompilerParams(
            dimension_semantics=("parallel", "parallel", "arbitrary"),
            vmem_limit_bytes=VMEM_LIMIT_BYTES),
    )(x_p, w_p, b_p)
    return out[:M, :N]


# ---------------------------------------------------------------------------
# Time-chunked sequential LSTM recurrence.
#   grid = (batch_blocks, time_chunks); h/c scratch persists across time chunks.
#   Output is written batch-major so no XLA transpose is needed afterwards.
# ---------------------------------------------------------------------------
def _lstm_recurrence_kernel(xg_ref, whh_ref, h_out_ref, h_sc, c_sc, chunk_sc):
    """
    xg_ref   : (tS, tB, 4H)  precomputed x@W_ih + (b_ih + b_hh), time-major chunk
    whh_ref  : (H, 4H)       hidden-to-hidden weights (gate order i, f, g, o)
    h_out_ref: (tB, tS, H)   hidden states for this chunk, batch-major
    h_sc/c_sc: (tB, H) f32   recurrent state, persists across time chunks
    chunk_sc : (tS, tB, H)   time-major staging buffer for this chunk
    """
    tS = xg_ref.shape[0]
    H = h_sc.shape[1]

    @pl.when(pl.program_id(1) == 0)          # first time chunk of this batch block
    def _():
        h_sc[...] = jnp.zeros_like(h_sc)
        c_sc[...] = jnp.zeros_like(c_sc)

    @pl.loop(0, tS)
    def _(t):
        # W_hh is re-read from VMEM each step (cheap) rather than kept live in vregs
        # across the serial loop (a (H,4H) f32 value would force spills every step).
        gates = xg_ref[t] + jnp.dot(h_sc[...], whh_ref[...],
                                    preferred_element_type=jnp.float32)   # (tB, 4H)

        i_g = jax.nn.sigmoid(gates[:, 0 * H:1 * H])
        f_g = jax.nn.sigmoid(gates[:, 1 * H:2 * H])
        g_g = jnp.tanh(gates[:, 2 * H:3 * H])
        o_g = jax.nn.sigmoid(gates[:, 3 * H:4 * H])

        c_new = f_g * c_sc[...] + i_g * g_g
        h_new = o_g * jnp.tanh(c_new)

        c_sc[...] = c_new
        h_sc[...] = h_new
        chunk_sc[t] = h_new                  # dense time-major write (leading index)

    # Fold the time-major -> batch-major layout change into the kernel so no separate
    # XLA transpose (HBM round trip over h) is needed.  Done in 8-step sub-blocks with
    # static slices to bound vreg pressure.
    for t0 in range(0, tS, 8):
        h_out_ref[:, t0:t0 + 8, :] = jnp.transpose(
            chunk_sc[t0:t0 + 8], (1, 0, 2)).astype(h_out_ref.dtype)


def _choose_time_chunk(S, tB, H, *, budget_bytes=12 * 1024 * 1024, max_ts=512):
    """Largest time chunk (multiple of 8, <= max_ts) whose pipeline buffers fit budget.

    Per time step the chunk costs ~(2*4H + 2*H + H)*tB*4 bytes of VMEM
    (double-buffered gate input, double-buffered h output, staging scratch).
    """
    bytes_per_step = (2 * 4 * H + 2 * H + H) * tB * 4
    ts = max(8, min(max_ts, budget_bytes // max(bytes_per_step, 1)))
    ts = (ts // 8) * 8
    return int(max(8, min(ts, _round_up(S, 8))))


def lstm_recurrence_pallas(xg_sbg, w_hh, *, tS, tB):
    """xg_sbg: (S_p, Bp, 4H) gate pre-activations. Returns h as (Bp, S_p, H) f32."""
    S_p, Bp, G = xg_sbg.shape
    H = w_hh.shape[0]
    assert S_p % tS == 0 and Bp % tB == 0

    return pl.pallas_call(
        _lstm_recurrence_kernel,
        out_shape=jax.ShapeDtypeStruct((Bp, S_p, H), jnp.float32),
        grid=(Bp // tB, S_p // tS),
        in_specs=[
            pl.BlockSpec((tS, tB, G), lambda b, t: (t, b, 0)),   # gate pre-act chunk
            pl.BlockSpec((H, G), lambda b, t: (0, 0)),           # W_hh (stays resident)
        ],
        out_specs=pl.BlockSpec((tB, tS, H), lambda b, t: (b, t, 0)),
        scratch_shapes=[
            pltpu.VMEM((tB, H), jnp.float32),      # h state (persists across chunks)
            pltpu.VMEM((tB, H), jnp.float32),      # c state
            pltpu.VMEM((tS, tB, H), jnp.float32),  # per-chunk staging buffer
        ],
        compiler_params=pltpu.CompilerParams(
            # batch blocks independent (v7x 2nd TensorCore); time chunks sequential.
            dimension_semantics=("parallel", "arbitrary"),
            vmem_limit_bytes=VMEM_LIMIT_BYTES),
    )(xg_sbg, w_hh)


# ---------------------------------------------------------------------------
# Vocab projection: logits[b, s, :] = h[b, s, :] @ W_out + b_out, reading the
# batch-major h directly (padded batch rows are never touched).
# ---------------------------------------------------------------------------
def _vocab_proj_kernel(h_ref, w_ref, b_ref, o_ref, *, operand_dtype):
    h = h_ref[0]                 # (tS, H)
    w = w_ref[...]               # (H, tn)
    if operand_dtype is not None:
        h = h.astype(operand_dtype)
        w = w.astype(operand_dtype)
    o_ref[0] = (jnp.dot(h, w, preferred_element_type=jnp.float32)
                + b_ref[...]).astype(o_ref.dtype)


def vocab_projection_pallas(h_bsH, w_out, b_out, B, *, tS, tn=512, operand_dtype=None):
    """h_bsH: (Bp, S_p, H) batch-major hidden states.  Returns (B, S_p, V_p) f32."""
    Bp, S_p, H = h_bsH.shape
    V = w_out.shape[1]
    tn = min(tn, _round_up(V, 128))
    V_p = _round_up(V, tn)

    w_p = jnp.pad(w_out, ((0, 0), (0, V_p - V))) if V_p != V else w_out
    b_p = jnp.pad(b_out, ((0, 0), (0, V_p - V))) if V_p != V else b_out

    # K (=H) is a single block: a (tS, H) x (H, tn) tile keeps the MXU busy for the
    # module's hidden sizes and avoids a separate accumulator pass.  Large tS (up to
    # 512) minimizes how many times W_out is re-streamed from HBM.
    return pl.pallas_call(
        functools.partial(_vocab_proj_kernel, operand_dtype=operand_dtype),
        out_shape=jax.ShapeDtypeStruct((B, S_p, V_p), jnp.float32),
        grid=(B, S_p // tS, V_p // tn),
        in_specs=[
            pl.BlockSpec((1, tS, H), lambda b, m, n: (b, m, 0)),
            pl.BlockSpec((H, tn), lambda b, m, n: (0, n)),
            pl.BlockSpec((1, tn), lambda b, m, n: (0, n)),
        ],
        out_specs=pl.BlockSpec((1, tS, tn), lambda b, m, n: (b, m, n)),
        compiler_params=pltpu.CompilerParams(
            dimension_semantics=("parallel", "parallel", "parallel"),
            vmem_limit_bytes=VMEM_LIMIT_BYTES),
    )(h_bsH, w_p, b_p)


# ---------------------------------------------------------------------------
# Full forward: embed -> hoisted input proj -> chunked LSTM recurrence -> vocab proj
# ---------------------------------------------------------------------------
def rnn_model_forward(input_ids, params, *, operand_dtype=None):
    """Full RNNModel.forward (rnn_type='lstm', num_layers=1). Returns (B, S, V) f32."""
    embed_table = params["embed"]                        # (V, H)
    B, S = input_ids.shape
    H = embed_table.shape[1]
    V = params["w_out"].shape[1]

    Bp = _round_up(B, 8)                                 # sublane-dense batch
    tB = Bp if Bp <= 8 else 8                            # batch block (v7x core split)
    tS = _choose_time_chunk(S, tB, H)                    # VMEM-bounded time chunk
    S_p = _round_up(S, tS)

    # Embedding gather, time-major: (S, B, H).
    # TODO(synk): fuse this gather into the input-projection kernel (scalar-prefetch
    # ids + DMA row gather) to avoid one HBM round trip over x.
    x_sbh = jnp.take(embed_table, input_ids.T, axis=0)

    # Hoisted input projection over the UNPADDED S*B token rows.
    xg = matmul_bias(x_sbh.reshape(S * B, H), params["w_ih"], params["bias"],
                     operand_dtype=operand_dtype)        # (S*B, 4H)

    # Pad batch -> Bp and time -> S_p only now (cheap relative to the matmuls).
    xg_sbg = xg.reshape(S, B, 4 * H)
    if Bp != B or S_p != S:
        xg_sbg = jnp.pad(xg_sbg, ((0, S_p - S), (0, Bp - B), (0, 0)))

    # Sequential recurrence, time-chunked, batch-major output (Bp, S_p, H).
    h_bsH = lstm_recurrence_pallas(xg_sbg, params["w_hh"], tS=tS, tB=tB)

    # Vocab projection (dominant FLOPs); padded batch rows never read, padded time
    # rows sliced off at the end.
    logits = vocab_projection_pallas(h_bsH, params["w_out"], params["b_out"], B,
                                     tS=tS, operand_dtype=operand_dtype)
    return logits[:, :S, :V]


# ---------------------------------------------------------------------------
# Pure-JAX reference (lax.scan) for correctness checking
# ---------------------------------------------------------------------------
def rnn_model_reference(input_ids, params):
    x = jnp.take(params["embed"], input_ids, axis=0)     # (B, S, H)
    B, S, H = x.shape

    def step(carry, x_t):
        h, c = carry
        gates = x_t @ params["w_ih"] + h @ params["w_hh"] + params["bias"]
        i_g = jax.nn.sigmoid(gates[:, 0 * H:1 * H])
        f_g = jax.nn.sigmoid(gates[:, 1 * H:2 * H])
        g_g = jnp.tanh(gates[:, 2 * H:3 * H])
        o_g = jax.nn.sigmoid(gates[:, 3 * H:4 * H])
        c_new = f_g * c + i_g * g_g
        h_new = o_g * jnp.tanh(c_new)
        return (h_new, c_new), h_new

    h0 = jnp.zeros((B, H), jnp.float32)
    c0 = jnp.zeros((B, H), jnp.float32)
    _, hs = jax.lax.scan(step, (h0, c0), jnp.transpose(x, (1, 0, 2)))  # (S, B, H)
    hs = jnp.transpose(hs, (1, 0, 2))                                  # (B, S, H)
    return hs @ params["w_out"] + params["b_out"]


def init_params(key, vocab_size, hidden_units):
    """Deterministic init (uniform +-1/sqrt(H), like PyTorch's default)."""
    H, V = hidden_units, vocab_size
    k = jax.random.split(key, 7)
    bound = 1.0 / jnp.sqrt(jnp.float32(H))
    u = lambda kk, shape: jax.random.uniform(kk, shape, jnp.float32, -bound, bound)
    # PyTorch LSTM stores weight_ih_l0 as (4H, H); we keep the transposed (H, 4H)
    # so kernels do x @ W.  Gate order is [i, f, g, o].  bias = b_ih + b_hh.
    return {
        "embed": jax.random.normal(k[0], (V, H), jnp.float32),
        "w_ih": u(k[1], (H, 4 * H)),
        "w_hh": u(k[2], (H, 4 * H)),
        "bias": (u(k[3], (1, 4 * H)) + u(k[4], (1, 4 * H))),
        "w_out": u(k[5], (H, V)),          # nn.Linear weight (V, H) transposed
        "b_out": u(k[6], (1, V)),
    }


if __name__ == "__main__":
    # Small shapes consistent with the module: rnn_type='lstm', num_layers=1.
    VOCAB = 256
    HIDDEN = 128
    BATCH = 2
    SEQ = 8

    key = jax.random.PRNGKey(0)
    pkey, ikey = jax.random.split(key)
    params = init_params(pkey, VOCAB, HIDDEN)
    input_ids = jax.random.randint(ikey, (BATCH, SEQ), 0, VOCAB, dtype=jnp.int32)

    forward = jax.jit(rnn_model_forward)
    logits = jax.block_until_ready(forward(input_ids, params))
    assert logits.shape == (BATCH, SEQ, VOCAB), logits.shape
    assert logits.dtype == jnp.float32

    ref = jax.block_until_ready(rnn_model_reference(input_ids, params))
    assert jnp.allclose(logits, ref, atol=1e-4, rtol=1e-4), \
        float(jnp.max(jnp.abs(logits - ref)))

    print("KERNEL_OK")
</pallas_src>

<mosaic_0001>
module attributes {stable_mosaic.version = 11 : i64} {
  func.func @_matmul_bias_kernel(%arg0: i32, %arg1: i32, %arg2: i32, %arg3: memref<16x128xf32, #tpu.memory_space<vmem>>, %arg4: memref<128x256xf32, #tpu.memory_space<vmem>>, %arg5: memref<1x256xf32, #tpu.memory_space<vmem>>, %arg6: memref<16x256xf32, #tpu.memory_space<vmem>>, %arg7: memref<16x256xf32, #tpu.memory_space<vmem>>) attributes {dimension_semantics = [#tpu.dimension_semantics<parallel>, #tpu.dimension_semantics<parallel>, #tpu.dimension_semantics<arbitrary>], iteration_bounds = array<i64: 1, 2, 1>, scalar_prefetch = 0 : i64, scratch_operands = 1 : i64, tpu.core_type = #tpu.core_type<tc>, window_params = [{transform_indices = @transform_0, window_bounds = array<i64: 16, 128>}, {transform_indices = @transform_1, window_bounds = array<i64: 128, 256>}, {transform_indices = @transform_2, window_bounds = array<i64: 1, 256>}, {transform_indices = @transform_3, window_bounds = array<i64: 16, 256>}]} {
    %c0_i32 = arith.constant 0 : i32
    %0 = arith.cmpi eq, %arg2, %c0_i32 : i32
    %1 = arith.extui %0 : i1 to i32
    %c0_i32_0 = arith.constant 0 : i32
    %2 = arith.cmpi ne, %1, %c0_i32_0 : i32
    scf.if %2 {
      %cst_10 = arith.constant 0.000000e+00 : f32
      %12 = vector.broadcast %cst_10 : f32 to vector<16x256xf32>
      %c0_11 = arith.constant 0 : index
      %c0_12 = arith.constant 0 : index
      %13 = vector.load %arg7[%c0_11, %c0_12] : memref<16x256xf32, #tpu.memory_space<vmem>>, vector<16x256xf32>
      tpu.vector_store %arg7[%c0_11, %c0_12], %12 {strides = array<i32>} : memref<16x256xf32, #tpu.memory_space<vmem>>, vector<16x256xf32>,
    } else {
    }
    %c0 = arith.constant 0 : index
    %c0_1 = arith.constant 0 : index
    %3 = vector.load %arg3[%c0, %c0_1] : memref<16x128xf32, #tpu.memory_space<vmem>>, vector<16x128xf32>
    %c0_2 = arith.constant 0 : index
    %c0_3 = arith.constant 0 : index
    %4 = vector.load %arg4[%c0_2, %c0_3] : memref<128x256xf32, #tpu.memory_space<vmem>>, vector<128x256xf32>
    %c0_4 = arith.constant 0 : index
    %c0_5 = arith.constant 0 : index
    %5 = vector.load %arg7[%c0_4, %c0_5] : memref<16x256xf32, #tpu.memory_space<vmem>>, vector<16x256xf32>
    %cst = arith.constant dense<0.000000e+00> : vector<16x256xf32>
    %6 = tpu.matmul %3, %4, %cst {dimension_numbers = #tpu.dot_dimension_numbers<[1], [0], [0], [1], [0, 0, 1, 1], [], []>} : vector<16x128xf32>, vector<128x256xf32>, vector<16x256xf32> -> vector<16x256xf32>
    %7 = arith.addf %5, %6 : vector<16x256xf32>
    %c0_6 = arith.constant 0 : index
    %c0_7 = arith.constant 0 : index
    %8 = vector.load %arg7[%c0_6, %c0_7] : memref<16x256xf32, #tpu.memory_space<vmem>>, vector<16x256xf32>
    tpu.vector_store %arg7[%c0_6, %c0_7], %7 {strides = array<i32>} : memref<16x256xf32, #tpu.memory_space<vmem>>, vector<16x256xf32>,
    %c0_i32_8 = arith.constant 0 : i32
    %9 = arith.cmpi eq, %arg2, %c0_i32_8 : i32
    %10 = arith.extui %9 : i1 to i32
    %c0_i32_9 = arith.constant 0 : i32
    %11 = arith.cmpi ne, %10, %c0_i32_9 : i32
    scf.if %11 {
      %c0_10 = arith.constant 0 : index
      %c0_11 = arith.constant 0 : index
      %12 = vector.load %arg7[%c0_10, %c0_11] : memref<16x256xf32, #tpu.memory_space<vmem>>, vector<16x256xf32>
      %c0_12 = arith.constant 0 : index
      %c0_13 = arith.constant 0 : index
      %13 = vector.load %arg5[%c0_12, %c0_13] : memref<1x256xf32, #tpu.memory_space<vmem>>, vector<1x256xf32>
      %14 = vector.broadcast %13 : vector<1x256xf32> to vector<16x256xf32>
      %15 = arith.addf %12, %14 : vector<16x256xf32>
      %c0_14 = arith.constant 0 : index
      %c0_15 = arith.constant 0 : index
      %16 = vector.load %arg6[%c0_14, %c0_15] : memref<16x256xf32, #tpu.memory_space<vmem>>, vector<16x256xf32>
      tpu.vector_store %arg6[%c0_14, %c0_15], %15 {strides = array<i32>} : memref<16x256xf32, #tpu.memory_space<vmem>>, vector<16x256xf32>,
    } else {
    }
    return
  }
  func.func @transform_0(%arg0: i32, %arg1: i32, %arg2: i32) -> (i32, i32) {
    %c0_i32 = arith.constant 0 : i32
    return %arg0, %arg2 : i32, i32
  }
  func.func @transform_1(%arg0: i32, %arg1: i32, %arg2: i32) -> (i32, i32) {
    %c0_i32 = arith.constant 0 : i32
    return %arg2, %arg1 : i32, i32
  }
  func.func @transform_2(%arg0: i32, %arg1: i32, %arg2: i32) -> (i32, i32) {
    %c0_i32 = arith.constant 0 : i32
    %c0_i32_0 = arith.constant 0 : i32
    return %c0_i32, %arg1 : i32, i32
  }
  func.func @transform_3(%arg0: i32, %arg1: i32, %arg2: i32) -> (i32, i32) {
    %c0_i32 = arith.constant 0 : i32
    return %arg0, %arg1 : i32, i32
  }
}

module attributes {stable_mosaic.version = 11 : i64} {
  func.func @_lstm_recurrence_kernel(%arg0: i32, %arg1: i32, %arg2: memref<8x8x512xf32, #tpu.memory_space<vmem>>, %arg3: memref<128x512xf32, #tpu.memory_space<vmem>>, %arg4: memref<8x8x128xf32, #tpu.memory_space<vmem>>, %arg5: memref<8x128xf32, #tpu.memory_space<vmem>>, %arg6: memref<8x128xf32, #tpu.memory_space<vmem>>, %arg7: memref<8x8x128xf32, #tpu.memory_space<vmem>>) attributes {dimension_semantics = [#tpu.dimension_semantics<parallel>, #tpu.dimension_semantics<arbitrary>], iteration_bounds = array<i64: 1, 1>, scalar_prefetch = 0 : i64, scratch_operands = 3 : i64, tpu.core_type = #tpu.core_type<tc>, window_params = [{transform_indices = @transform_0, window_bounds = array<i64: 8, 8, 512>}, {pipeline_mode = #tpu.pipeline_mode<synchronous>, transform_indices = @transform_1, window_bounds = array<i64: 128, 512>}, {transform_indices = @transform_2, window_bounds = array<i64: 8, 8, 128>}]} {
    %c0_i32 = arith.constant 0 : i32
    %0 = arith.cmpi eq, %arg1, %c0_i32 : i32
    %1 = arith.extui %0 : i1 to i32
    %c0_i32_0 = arith.constant 0 : i32
    %2 = arith.cmpi ne, %1, %c0_i32_0 : i32
    scf.if %2 {
      %cst = arith.constant 0.000000e+00 : f32
      %7 = vector.broadcast %cst : f32 to vector<8x128xf32>
      %c0_8 = arith.constant 0 : index
      %c0_9 = arith.constant 0 : index
      %8 = vector.load %arg5[%c0_8, %c0_9] : memref<8x128xf32, #tpu.memory_space<vmem>>, vector<8x128xf32>
      tpu.vector_store %arg5[%c0_8, %c0_9], %7 {strides = array<i32>} : memref<8x128xf32, #tpu.memory_space<vmem>>, vector<8x128xf32>,
      %cst_10 = arith.constant 0.000000e+00 : f32
      %9 = vector.broadcast %cst_10 : f32 to vector<8x128xf32>
      %c0_11 = arith.constant 0 : index
      %c0_12 = arith.constant 0 : index
      %10 = vector.load %arg6[%c0_11, %c0_12] : memref<8x128xf32, #tpu.memory_space<vmem>>, vector<8x128xf32>
      tpu.vector_store %arg6[%c0_11, %c0_12], %9 {strides = array<i32>} : memref<8x128xf32, #tpu.memory_space<vmem>>, vector<8x128xf32>,
    } else {
    }
    %c0_i32_1 = arith.constant 0 : i32
    %c8_i32 = arith.constant 8 : i32
    %3 = arith.addi %c0_i32_1, %c8_i32 : i32
    %c1_i32 = arith.constant 1 : i32
    scf.for %arg8 = %c0_i32_1 to %3 step %c1_i32  : i32 {
      %c1_i32_8 = arith.constant 1 : i32
      %7 = arith.muli %arg8, %c1_i32_8 : i32
      %c0_i32_9 = arith.constant 0 : i32
      %8 = arith.addi %c0_i32_9, %7 : i32
      %9 = arith.index_cast %8 : i32 to index
      %c0_10 = arith.constant 0 : index
      %c0_11 = arith.constant 0 : index
      %10 = vector.load %arg2[%9, %c0_10, %c0_11] : memref<8x8x512xf32, #tpu.memory_space<vmem>>, vector<1x8x512xf32>
      %11 = vector.shape_cast %10 : vector<1x8x512xf32> to vector<8x512xf32>
      %c0_12 = arith.constant 0 : index
      %c0_13 = arith.constant 0 : index
      %12 = vector.load %arg5[%c0_12, %c0_13] : memref<8x128xf32, #tpu.memory_space<vmem>>, vector<8x128xf32>
      %c0_14 = arith.constant 0 : index
      %c0_15 = arith.constant 0 : index
      %13 = vector.load %arg3[%c0_14, %c0_15] : memref<128x512xf32, #tpu.memory_space<vmem>>, vector<128x512xf32>
      %cst = arith.constant dense<0.000000e+00> : vector<8x512xf32>
      %14 = tpu.matmul %12, %13, %cst {dimension_numbers = #tpu.dot_dimension_numbers<[1], [0], [0], [1], [0, 0, 1, 1], [], []>} : vector<8x128xf32>, vector<128x512xf32>, vector<8x512xf32> -> vector<8x512xf32>
      %15 = arith.addf %11, %14 : vector<8x512xf32>
      %16 = vector.extract_strided_slice %15 {offsets = [0, 0], sizes = [8, 128], strides = [1, 1]} : vector<8x512xf32> to vector<8x128xf32>
      %17 = arith.negf %16 : vector<8x128xf32>
      %18 = math.exp %17 : vector<8x128xf32>
      %cst_16 = arith.constant 1.000000e+00 : f32
      %19 = vector.broadcast %cst_16 : f32 to vector<8x128xf32>
      %20 = arith.addf %19, %18 : vector<8x128xf32>
      %21 = arith.divf %19, %20 : vector<8x128xf32>
      %22 = vector.extract_strided_slice %15 {offsets = [0, 128], sizes = [8, 128], strides = [1, 1]} : vector<8x512xf32> to vector<8x128xf32>
      %23 = arith.negf %22 : vector<8x128xf32>
      %24 = math.exp %23 : vector<8x128xf32>
      %cst_17 = arith.constant 1.000000e+00 : f32
      %25 = vector.broadcast %cst_17 : f32 to vector<8x128xf32>
      %26 = arith.addf %25, %24 : vector<8x128xf32>
      %27 = arith.divf %25, %26 : vector<8x128xf32>
      %28 = vector.extract_strided_slice %15 {offsets = [0, 256], sizes = [8, 128], strides = [1, 1]} : vector<8x512xf32> to vector<8x128xf32>
      %29 = math.tanh %28 : vector<8x128xf32>
      %30 = vector.extract_strided_slice %15 {offsets = [0, 384], sizes = [8, 128], strides = [1, 1]} : vector<8x512xf32> to vector<8x128xf32>
      %31 = arith.negf %30 : vector<8x128xf32>
      %32 = math.exp %31 : vector<8x128xf32>
      %cst_18 = arith.constant 1.000000e+00 : f32
      %33 = vector.broadcast %cst_18 : f32 to vector<8x128xf32>
      %34 = arith.addf %33, %32 : vector<8x128xf32>
      %35 = arith.divf %33, %34 : vector<8x128xf32>
      %c0_19 = arith.constant 0 : index
      %c0_20 = arith.constant 0 : index
      %36 = vector.load %arg6[%c0_19, %c0_20] : memref<8x128xf32, #tpu.memory_space<vmem>>, vector<8x128xf32>
      %37 = arith.mulf %27, %36 : vector<8x128xf32>
      %38 = arith.mulf %21, %29 : vector<8x128xf32>
      %39 = arith.addf %37, %38 : vector<8x128xf32>
      %40 = math.tanh %39 : vector<8x128xf32>
      %41 = arith.mulf %35, %40 : vector<8x128xf32>
      %c0_21 = arith.constant 0 : index
      %c0_22 = arith.constant 0 : index
      %42 = vector.load %arg6[%c0_21, %c0_22] : memref<8x128xf32, #tpu.memory_space<vmem>>, vector<8x128xf32>
      tpu.vector_store %arg6[%c0_21, %c0_22], %39 {strides = array<i32>} : memref<8x128xf32, #tpu.memory_space<vmem>>, vector<8x128xf32>,
      %c0_23 = arith.constant 0 : index
      %c0_24 = arith.constant 0 : index
      %43 = vector.load %arg5[%c0_23, %c0_24] : memref<8x128xf32, #tpu.memory_space<vmem>>, vector<8x128xf32>
      tpu.vector_store %arg5[%c0_23, %c0_24], %41 {strides = array<i32>} : memref<8x128xf32, #tpu.memory_space<vmem>>, vector<8x128xf32>,
      %44 = arith.index_cast %8 : i32 to index
      %c0_25 = arith.constant 0 : index
      %c0_26 = arith.constant 0 : index
      %45 = vector.load %arg7[%44, %c0_25, %c0_26] : memref<8x8x128xf32, #tpu.memory_space<vmem>>, vector<1x8x128xf32>
      %46 = vector.shape_cast %45 : vector<1x8x128xf32> to vector<8x128xf32>
      %47 = vector.shape_cast %41 : vector<8x128xf32> to vector<1x8x128xf32>
      tpu.vector_store %arg7[%44, %c0_25, %c0_26], %47 {strides = array<i32>} : memref<8x8x128xf32, #tpu.memory_space<vmem>>, vector<1x8x128xf32>,
    }
    %c8_i32_2 = arith.constant 8 : i32
    %c0 = arith.constant 0 : index
    %c0_3 = arith.constant 0 : index
    %c0_4 = arith.constant 0 : index
    %4 = vector.load %arg7[%c0, %c0_3, %c0_4] : memref<8x8x128xf32, #tpu.memory_space<vmem>>, vector<8x8x128xf32>
    %5 = tpu.transpose %4, [1, 0, 2] : vector<8x8x128xf32> -> vector<8x8x128xf32>
    %c0_5 = arith.constant 0 : index
    %c0_6 = arith.constant 0 : index
    %c0_7 = arith.constant 0 : index
    %6 = vector.load %arg4[%c0_5, %c0_6, %c0_7] : memref<8x8x128xf32, #tpu.memory_space<vmem>>, vector<8x8x128xf32>
    tpu.vector_store %arg4[%c0_5, %c0_6, %c0_7], %5 {strides = array<i32>} : memref<8x8x128xf32, #tpu.memory_space<vmem>>, vector<8x8x128xf32>,
    return
  }
  func.func @transform_0(%arg0: i32, %arg1: i32) -> (i32, i32, i32) {
    %c0_i32 = arith.constant 0 : i32
    %c0_i32_0 = arith.constant 0 : i32
    return %arg1, %arg0, %c0_i32 : i32, i32, i32
  }
  func.func @transform_1(%arg0: i32, %arg1: i32) -> (i32, i32) {
    %c0_i32 = arith.constant 0 : i32
    %c0_i32_0 = arith.constant 0 : i32
    %c0_i32_1 = arith.constant 0 : i32
    return %c0_i32, %c0_i32_0 : i32, i32
  }
  func.func @transform_2(%arg0: i32, %arg1: i32) -> (i32, i32, i32) {
    %c0_i32 = arith.constant 0 : i32
    %c0_i32_0 = arith.constant 0 : i32
    return %arg0, %arg1, %c0_i32 : i32, i32, i32
  }
}

module attributes {stable_mosaic.version = 11 : i64} {
  func.func @_vocab_proj_kernel(%arg0: i32, %arg1: i32, %arg2: i32, %arg3: memref<1x8x128xf32, #tpu.memory_space<vmem>>, %arg4: memref<128x256xf32, #tpu.memory_space<vmem>>, %arg5: memref<1x256xf32, #tpu.memory_space<vmem>>, %arg6: memref<1x8x256xf32, #tpu.memory_space<vmem>>) attributes {dimension_semantics = [#tpu.dimension_semantics<parallel>, #tpu.dimension_semantics<parallel>, #tpu.dimension_semantics<parallel>], iteration_bounds = array<i64: 2, 1, 1>, scalar_prefetch = 0 : i64, scratch_operands = 0 : i64, tpu.core_type = #tpu.core_type<tc>, window_params = [{transform_indices = @transform_0, window_bounds = array<i64: 1, 8, 128>}, {transform_indices = @transform_1, window_bounds = array<i64: 128, 256>}, {transform_indices = @transform_2, window_bounds = array<i64: 1, 256>}, {transform_indices = @transform_3, window_bounds = array<i64: 1, 8, 256>}]} {
    %c0 = arith.constant 0 : index
    %c0_0 = arith.constant 0 : index
    %c0_1 = arith.constant 0 : index
    %0 = vector.load %arg3[%c0, %c0_0, %c0_1] : memref<1x8x128xf32, #tpu.memory_space<vmem>>, vector<1x8x128xf32>
    %1 = vector.shape_cast %0 : vector<1x8x128xf32> to vector<8x128xf32>
    %c0_2 = arith.constant 0 : index
    %c0_3 = arith.constant 0 : index
    %2 = vector.load %arg4[%c0_2, %c0_3] : memref<128x256xf32, #tpu.memory_space<vmem>>, vector<128x256xf32>
    %cst = arith.constant dense<0.000000e+00> : vector<8x256xf32>
    %3 = tpu.matmul %1, %2, %cst {dimension_numbers = #tpu.dot_dimension_numbers<[1], [0], [0], [1], [0, 0, 1, 1], [], []>} : vector<8x128xf32>, vector<128x256xf32>, vector<8x256xf32> -> vector<8x256xf32>
    %c0_4 = arith.constant 0 : index
    %c0_5 = arith.constant 0 : index
    %4 = vector.load %arg5[%c0_4, %c0_5] : memref<1x256xf32, #tpu.memory_space<vmem>>, vector<1x256xf32>
    %5 = vector.broadcast %4 : vector<1x256xf32> to vector<8x256xf32>
    %6 = arith.addf %3, %5 : vector<8x256xf32>
    %c0_6 = arith.constant 0 : index
    %c0_7 = arith.constant 0 : index
    %c0_8 = arith.constant 0 : index
    %7 = vector.load %arg6[%c0_6, %c0_7, %c0_8] : memref<1x8x256xf32, #tpu.memory_space<vmem>>, vector<1x8x256xf32>
    %8 = vector.shape_cast %7 : vector<1x8x256xf32> to vector<8x256xf32>
    %9 = vector.shape_cast %6 : vector<8x256xf32> to vector<1x8x256xf32>
    tpu.vector_store %arg6[%c0_6, %c0_7, %c0_8], %9 {strides = array<i32>} : memref<1x8x256xf32, #tpu.memory_space<vmem>>, vector<1x8x256xf32>,
    return
  }
  func.func @transform_0(%arg0: i32, %arg1: i32, %arg2: i32) -> (i32, i32, i32) {
    %c0_i32 = arith.constant 0 : i32
    %c0_i32_0 = arith.constant 0 : i32
    return %arg0, %arg1, %c0_i32 : i32, i32, i32
  }
  func.func @transform_1(%arg0: i32, %arg1: i32, %arg2: i32) -> (i32, i32) {
    %c0_i32 = arith.constant 0 : i32
    %c0_i32_0 = arith.constant 0 : i32
    return %c0_i32, %arg2 : i32, i32
  }
  func.func @transform_2(%arg0: i32, %arg1: i32, %arg2: i32) -> (i32, i32) {
    %c0_i32 = arith.constant 0 : i32
    %c0_i32_0 = arith.constant 0 : i32
    return %c0_i32, %arg2 : i32, i32
  }
  func.func @transform_3(%arg0: i32, %arg1: i32, %arg2: i32) -> (i32, i32, i32) {
    %c0_i32 = arith.constant 0 : i32
    return %arg0, %arg1, %arg2 : i32, i32, i32
  }
}

</mosaic_0001>

<llo_original>
// kernel: rnn_model_forward.5
$region0: #{rnn_model_forward.5}
  #allocation0 [shape = 'u32[]', space=smem, size = 0x4, offset = 0x4, fixed_abs, tag = 'smem constant byte address 0x4 - core index']
  #allocation1 [shape = 'u32[144,128]{1,0:T(1,128)}', space=vmem, size = 0x12000, scoped, tag = 'internal scratch']
  %s0 = inlined_call_operand.vmem [shape: f32[8,8,128], index: 0, kind: input, shape index: {}]
  %s1 = inlined_call_operand.vmem [shape: f32[128,256], index: 1, kind: input, shape index: {}]
  %s2 = inlined_call_operand.vmem [shape: f32[1,256], index: 2, kind: input, shape index: {}]
  %s3 = inlined_call_operand.hbm [shape: f32[2,8,256], index: 3, kind: output, shape index: {}]
  %s4 = sld [smem:[#allocation0]]
  $region45: #{rnn_model_forward.5} parent=0
    _
  %s6 = ssub.s32 1, %s4
  %s7 = scalar_select 0, %s6, %s4
  $region1: #{rnn_model_forward.5} parent=0
    #allocation2 [shape = 'u8[16384]{0}', space=vmem, size = 0x4000, scoped, tag = 'output window, operand 0']
    #allocation3 [shape = 's32[2]{0}', space=sflag, size = 0x8, scoped, tag = 'scoped memory for rnn_model_forward.5']
    %8 = vsyncpa [#allocation3], 0
    %s9 = scalar_lea.sflag [#allocation3], 1
    %10 = vsyncpa %s9, 0
    loop: start=0, step=1, limit=4
    $region2: #{rnn_model_forward.5} parent=1 // loop_pre_header
      _
    $region3: #{rnn_model_forward.5} parent=1 // loop_header
      %s12 = sphi 0, %s16
      %p13 = scmp.ge.s32.totalorder %s12, 4
      %s19 = sphi 0, %s38
      %s20 = sphi 0, %s34
      %s21 = sphi 0, %s30
      %s22 = sphi 0, %s19
      %s23 = sphi 0, %s20
      %s24 = sphi 0, %s21
      %s25 = sphi 0, %s22
      %s26 = sphi 0, %s23
      %s27 = sphi 0, %s24
      %s43 = sphi 0, %s45
      %s46 = sphi 0, %s43
      %s47 = sphi 0, %s46
      %s63 = sphi 0, %s47
      %s69 = sphi 0, %s71
      %s72 = sphi 0, %s69
      %s73 = sphi 0, %s72
      %s89 = sphi 0, %s73
      %s95 = sphi 0, %s97
      %s98 = sphi 0, %s95
      %s99 = sphi 0, %s98
      %s115 = sphi 0, %s99
      %s125 = sphi 0, %s127
      %s128 = sphi 0, %s125
      %s129 = sphi 0, %s128
      %s145 = sphi 0, %s129
    $region4: #{rnn_model_forward.5} parent=1 // loop_header_branch
      %15 = sbr.rel (%p13) target = $region8
    $region5: #{rnn_model_forward.5} parent=1 // loop_body
      %s17 = ssub.s32 %s12, 1
      %s18 = ssub.s32 %s12, 2
      %s28 = sadd.s32 1, %s21
      %p29 = scmp.ge.s32.totalorder %s28, 1
      %s30 = scalar_select %p29, 0, %s28
      %s31 = sadd.s32 1, %s20
      %s32 = scalar_select %p29, %s31, %s20
      %p33 = scmp.ge.s32.totalorder %s32, 1
      %s34 = scalar_select %p33, 0, %s32
      %s35 = sadd.s32 1, %s19
      %s36 = scalar_select %p33, %s35, %s19
      %p37 = scmp.ge.s32.totalorder %s36, 2
      %s38 = scalar_select %p37, 0, %s36
      %s39 = ssub.s32 %s19, %s38
      %s40 = ssub.s32 %s20, %s34
      %s41 = sor.u32 %s39, %s40
      %p42 = scmp.eq.s32.totalorder %s41, 0
      %s44 = sadd.s32 %s43, 1
      %s45 = scalar_select %p42, %s43, %s44
      %p48 = pneg %p42
      %p49 = scmp.eq.s32.totalorder %s12, 1
      %p50 = por %p48, %p49
      %p51 = scmp.ne.s32.totalorder %s43, %s46
      %p52 = scmp.eq.s32.totalorder %s12, 0
      %p53 = por %p51, %p52
      %p54 = scmp.ne.s32.totalorder %s43, %s46
      %p55 = scmp.eq.s32.totalorder %s17, 1
      %p56 = por %p54, %p55
      %p57 = scmp.ne.s32.totalorder %s46, %s47
      %p58 = scmp.eq.s32.totalorder %s17, 0
      %p59 = por %p57, %p58
      %p60 = scmp.ne.s32.totalorder %s46, %s47
      %p61 = scmp.eq.s32.totalorder %s18, 1
      %p62 = por %p60, %p61
      %p64 = scmp.ne.s32.totalorder %s47, %s63
      %p65 = scmp.eq.s32.totalorder %s18, 0
      %p66 = por %p64, %p65
      %s67 = ssub.s32 %s21, %s30
      %p68 = scmp.eq.s32.totalorder %s67, 0
      %s70 = sadd.s32 %s69, 1
      %s71 = scalar_select %p68, %s69, %s70
      %p74 = pneg %p68
      %p75 = scmp.eq.s32.totalorder %s12, 1
      %p76 = por %p74, %p75
      %p77 = scmp.ne.s32.totalorder %s69, %s72
      %p78 = scmp.eq.s32.totalorder %s12, 0
      %p79 = por %p77, %p78
      %p80 = scmp.ne.s32.totalorder %s69, %s72
      %p81 = scmp.eq.s32.totalorder %s17, 1
      %p82 = por %p80, %p81
      %p83 = scmp.ne.s32.totalorder %s72, %s73
      %p84 = scmp.eq.s32.totalorder %s17, 0
      %p85 = por %p83, %p84
      %p86 = scmp.ne.s32.totalorder %s72, %s73
      %p87 = scmp.eq.s32.totalorder %s18, 1
      %p88 = por %p86, %p87
      %p90 = scmp.ne.s32.totalorder %s73, %s89
      %p91 = scmp.eq.s32.totalorder %s18, 0
      %p92 = por %p90, %p91
      %s93 = ssub.s32 %s21, %s30
      %p94 = scmp.eq.s32.totalorder %s93, 0
      %s96 = sadd.s32 %s95, 1
      %s97 = scalar_select %p94, %s95, %s96
      %p100 = pneg %p94
      %p101 = scmp.eq.s32.totalorder %s12, 1
      %p102 = por %p100, %p101
      %p103 = scmp.ne.s32.totalorder %s95, %s98
      %p104 = scmp.eq.s32.totalorder %s12, 0
      %p105 = por %p103, %p104
      %p106 = scmp.ne.s32.totalorder %s95, %s98
      %p107 = scmp.eq.s32.totalorder %s17, 1
      %p108 = por %p106, %p107
      %p109 = scmp.ne.s32.totalorder %s98, %s99
      %p110 = scmp.eq.s32.totalorder %s17, 0
      %p111 = por %p109, %p110
      %p112 = scmp.ne.s32.totalorder %s98, %s99
      %p113 = scmp.eq.s32.totalorder %s18, 1
      %p114 = por %p112, %p113
      %p116 = scmp.ne.s32.totalorder %s99, %s115
      %p117 = scmp.eq.s32.totalorder %s18, 0
      %p118 = por %p116, %p117
      %s119 = ssub.s32 %s19, %s38
      %s120 = ssub.s32 %s20, %s34
      %s121 = sor.u32 %s119, %s120
      %s122 = ssub.s32 %s21, %s30
      %s123 = sor.u32 %s121, %s122
      %p124 = scmp.eq.s32.totalorder %s123, 0
      %s126 = sadd.s32 %s125, 1
      %s127 = scalar_select %p124, %s125, %s126
      %p130 = pneg %p124
      %p131 = scmp.eq.s32.totalorder %s12, 1
      %p132 = por %p130, %p131
      %p133 = scmp.ne.s32.totalorder %s125, %s128
      %p134 = scmp.eq.s32.totalorder %s12, 0
      %p135 = por %p133, %p134
      %p136 = scmp.ne.s32.totalorder %s125, %s128
      %p137 = scmp.eq.s32.totalorder %s17, 1
      %p138 = por %p136, %p137
      %p139 = scmp.ne.s32.totalorder %s128, %s129
      %p140 = scmp.eq.s32.totalorder %s17, 0
      %p141 = por %p139, %p140
      %p142 = scmp.ne.s32.totalorder %s128, %s129
      %p143 = scmp.eq.s32.totalorder %s18, 1
      %p144 = por %p142, %p143
      %p146 = scmp.ne.s32.totalorder %s129, %s145
      %p147 = scmp.eq.s32.totalorder %s18, 0
      %p148 = por %p146, %p147
      %p149 = scmp.le.s32.totalorder 1, %s12
      %p150 = scmp.lt.s32.totalorder %s12, 3
      %p151 = pnand %p149, %p150
      %p152 = pneg %p151
      // Predicated region
      $region9: #{rnn_model_forward.5} parent=5 // pred_check
        _
      $region10: #{rnn_model_forward.5} parent=5 // pred_check_branch
        %154 = sbr.rel (%p151) target = $region12
      $region11: #{rnn_model_forward.5} parent=5 // pred_region
        %s155 = ssub.s32 %s12, 1
        // Predicated region
        $region13: #{rnn_model_forward.5} parent=11 // pred_check
          %p156 = pneg %p85
        $region14: #{rnn_model_forward.5} parent=11 // pred_check_branch
          %158 = sbr.rel (%p156) target = $region16
        $region15: #{rnn_model_forward.5} parent=11 // pred_region
          %s159 = smul.u32 2, %s24
          %p160 = scmp.lt.s32.totalorder %s159, 1
          %s161 = scalar_select %p160, %s159, 1
          %s162 = smul.addr %s161, 8
          %s163 = scalar_lea.vmem %s1, %s162
          %s164 = smul.u32 2, %s24
        $region16: #{rnn_model_forward.5} parent=11 // pred_fallthru
          _
        // Predicated region
        $region17: #{rnn_model_forward.5} parent=11 // pred_check
          %p165 = pneg %p111
        $region18: #{rnn_model_forward.5} parent=11 // pred_check_branch
          %167 = sbr.rel (%p165) target = $region20
        $region19: #{rnn_model_forward.5} parent=11 // pred_region
          %s168 = smul.u32 2, %s24
          %p169 = scmp.lt.s32.totalorder %s168, 1
          %s170 = scalar_select %p169, %s168, 1
          %s171 = scalar_lea.vmem %s2, %s170
          %s172 = smul.u32 2, %s24
        $region20: #{rnn_model_forward.5} parent=11 // pred_fallthru
          _
      $region12: #{rnn_model_forward.5} parent=5 // pred_fallthru
        _
      %p173 = scmp.lt.s32.totalorder %s12, 2
      // Predicated region
      $region21: #{rnn_model_forward.5} parent=5 // pred_check
        %p174 = pneg %p173
      $region22: #{rnn_model_forward.5} parent=5 // pred_check_branch
        %176 = sbr.rel (%p174) target = $region24
      $region23: #{rnn_model_forward.5} parent=5 // pred_region
        // Predicated region
        $region25: #{rnn_model_forward.5} parent=23 // pred_check
          %p177 = pneg %p53
        $region26: #{rnn_model_forward.5} parent=23 // pred_check_branch
          %179 = sbr.rel (%p177) target = $region28
        $region27: #{rnn_model_forward.5} parent=23 // pred_region
          %p180 = scmp.lt.s32.totalorder %s19, 7
          %s181 = scalar_select %p180, %s19, 7
          %p182 = scmp.lt.s32.totalorder %s20, 0
          %s183 = scalar_select %p182, %s20, 0
          %s184 = sadd.s32 %s183, %s181
          %s185 = smul.addr %s184, 8
          %s186 = scalar_lea.vmem %s0, %s185
        $region28: #{rnn_model_forward.5} parent=23 // pred_fallthru
          _
      $region24: #{rnn_model_forward.5} parent=5 // pred_fallthru
        _
      %p187 = scmp.le.s32.totalorder 1, %s12
      %p188 = scmp.lt.s32.totalorder %s12, 3
      %p189 = pnand %p187, %p188
      %p190 = pneg %p189
      // Predicated region
      $region29: #{rnn_model_forward.5} parent=5 // pred_check
        _
      $region30: #{rnn_model_forward.5} parent=5 // pred_check_branch
        %192 = sbr.rel (%p189) target = $region32
      $region31: #{rnn_model_forward.5} parent=5 // pred_region
        %s193 = ssub.s32 %s12, 1
        %p194 = scmp.lt.s32.totalorder %s22, 7
        %s195 = scalar_select %p194, %s22, 7
        %p196 = scmp.lt.s32.totalorder %s23, 0
        %s197 = scalar_select %p196, %s23, 0
        %s198 = sadd.s32 %s197, %s195
        %s199 = smul.addr %s198, 8
        %s200 = scalar_lea.vmem %s0, %s199
        %p201 = pneg %p59
        %p202 = pneg %p56
        %s203 = smul.u32 2, %s24
        %p204 = scmp.lt.s32.totalorder %s203, 1
        %s205 = scalar_select %p204, %s203, 1
        %s206 = smul.addr %s205, 8
        %s207 = scalar_lea.vmem %s1, %s206
        %p208 = pneg %p85
        %p209 = pneg %p82
        %s210 = smul.u32 2, %s24
        %p211 = scmp.lt.s32.totalorder %s210, 1
        %s212 = scalar_select %p211, %s210, 1
        %s213 = scalar_lea.vmem %s2, %s212
        %p214 = pneg %p111
        %p215 = pneg %p108
        %p216 = pneg %p141
        %p217 = pneg %p138
        %s218 = sand.u32 %s128, 1
        %s219 = scalar_lea.sflag [#allocation3], %s218
        %s220 = sand.u32 %s128, 1
        %s221 = smul.addr %s220, 16
        %s222 = scalar_lea.vmem [#allocation2], %s221
        %p223 = scmp.lt.s32.totalorder %s22, 7
        %s224 = scalar_select %p223, %s22, 7
        %p225 = scmp.lt.s32.totalorder %s23, 0
        %s226 = scalar_select %p225, %s23, 0
        %s227 = sadd.s32 %s226, %s224
        %s228 = smul.addr %s227, 8
        %s229 = scalar_lea.vmem %s0, %s228
        %s230 = smul.u32 2, %s24
        %p231 = scmp.lt.s32.totalorder %s230, 1
        %s232 = scalar_select %p231, %s230, 1
        %s233 = smul.addr %s232, 8
        %s234 = scalar_lea.vmem %s1, %s233
        %s235 = smul.u32 2, %s24
        %s236 = smul.u32 2, %s24
        %p237 = scmp.lt.s32.totalorder %s236, 1
        %s238 = scalar_select %p237, %s236, 1
        %s239 = scalar_lea.vmem %s2, %s238
        %s240 = smul.u32 2, %s24
        %s241 = smul.u32 2, %s24
        %v242 = vld [vmem:[%s229] sm:$0xff]
        %v243 = vld [vmem:[%s234] sm:$0xff]
        %v244 = vld [vmem:[%s234 + $0x8] sm:$0xff]
        %v245 = vld [vmem:[%s234 + $0x10] sm:$0xff]
        %v246 = vld [vmem:[%s234 + $0x18] sm:$0xff]
        %v247 = vld [vmem:[%s234 + $0x20] sm:$0xff]
        %v248 = vld [vmem:[%s234 + $0x28] sm:$0xff]
        %v249 = vld [vmem:[%s234 + $0x30] sm:$0xff]
        %v250 = vld [vmem:[%s234 + $0x38] sm:$0xff]
        %v251 = vld [vmem:[%s234 + $0x40] sm:$0xff]
        %v252 = vld [vmem:[%s234 + $0x48] sm:$0xff]
        %v253 = vld [vmem:[%s234 + $0x50] sm:$0xff]
        %v254 = vld [vmem:[%s234 + $0x58] sm:$0xff]
        %v255 = vld [vmem:[%s234 + $0x60] sm:$0xff]
        %v256 = vld [vmem:[%s234 + $0x68] sm:$0xff]
        %v257 = vld [vmem:[%s234 + $0x70] sm:$0xff]
        %v258 = vld [vmem:[%s234 + $0x78] sm:$0xff]
        %v259 = vld [vmem:[%s234 + $0x80] sm:$0xff]
        %v260 = vld [vmem:[%s234 + $0x88] sm:$0xff]
        %v261 = vld [vmem:[%s234 + $0x90] sm:$0xff]
        %v262 = vld [vmem:[%s234 + $0x98] sm:$0xff]
        %v263 = vld [vmem:[%s234 + $0xa0] sm:$0xff]
        %v264 = vld [vmem:[%s234 + $0xa8] sm:$0xff]
        %v265 = vld [vmem:[%s234 + $0xb0] sm:$0xff]
        %v266 = vld [vmem:[%s234 + $0xb8] sm:$0xff]
        %v267 = vld [vmem:[%s234 + $0xc0] sm:$0xff]
        %v268 = vld [vmem:[%s234 + $0xc8] sm:$0xff]
        %v269 = vld [vmem:[%s234 + $0xd0] sm:$0xff]
        %v270 = vld [vmem:[%s234 + $0xd8] sm:$0xff]
        %v271 = vld [vmem:[%s234 + $0xe0] sm:$0xff]
        %v272 = vld [vmem:[%s234 + $0xe8] sm:$0xff]
        %v273 = vld [vmem:[%s234 + $0xf0] sm:$0xff]
        %v274 = vld [vmem:[%s234 + $0xf8] sm:$0xff]
        %v275 = vld [vmem:[%s239] sm:$0x3]
        %v277 = vlaneseq
        %v278 = vshrl.u32 %v277, 7
        %v279 = vsub.s32 0, %v278
        %v280 = vrot.slane %v275, %v279
        %v281 = vlaneseq
        %v282 = vshrl.u32 %v281, 7
        %v283 = vsub.s32 1, %v282
        %v284 = vrot.slane %v275, %v283
        %287 = vmatprep.subr.mxu0 %v244
        %288 = vmatpush1.msra.mxu0 %v243
        %289 = vmatprep.subr.mxu0 %v246
        %290 = vmatpush1.msra.mxu0 %v245
        %291 = vmatprep.subr.mxu0 %v248
        %292 = vmatpush1.msra.mxu0 %v247
        %293 = vmatprep.subr.mxu0 %v250
        %294 = vmatpush1.msra.mxu0 %v249
        %295 = vmatprep.subr.mxu0 %v252
        %296 = vmatpush1.msra.mxu0 %v251
        %297 = vmatprep.subr.mxu0 %v254
        %298 = vmatpush1.msra.mxu0 %v253
        %299 = vmatprep.subr.mxu0 %v256
        %300 = vmatpush1.msra.mxu0 %v255
        %301 = vmatprep.subr.mxu0 %v258
        %302 = vmatpush1.msra.mxu0 %v257
        %303 = vmatprep.subr.mxu0 %v260
        %304 = vmatpush1.msra.mxu0 %v259
        %305 = vmatprep.subr.mxu0 %v262
        %306 = vmatpush1.msra.mxu0 %v261
        %307 = vmatprep.subr.mxu0 %v264
        %308 = vmatpush1.msra.mxu0 %v263
        %309 = vmatprep.subr.mxu0 %v266
        %310 = vmatpush1.msra.mxu0 %v265
        %311 = vmatprep.subr.mxu0 %v268
        %312 = vmatpush1.msra.mxu0 %v267
        %313 = vmatprep.subr.mxu0 %v270
        %314 = vmatpush1.msra.mxu0 %v269
        %315 = vmatprep.subr.mxu0 %v272
        %316 = vmatpush1.msra.mxu0 %v271
        %317 = vmatprep.subr.mxu0 %v274
        %318 = vmatpush1.msra.mxu0 %v273
        %319 = vmatprep.subr.mxu0 0.0
        %320 = vmatpush1.msra.mxu0 0.0
        %321 = vmatprep.subr.mxu0 0.0
        %322 = vmatpush1.msra.mxu0 0.0
        %323 = vmatprep.subr.mxu0 0.0
        %324 = vmatpush1.msra.mxu0 0.0
        %325 = vmatprep.subr.mxu0 0.0
        %326 = vmatpush1.msra.mxu0 0.0
        %327 = vmatprep.subr.mxu0 0.0
        %328 = vmatpush1.msra.mxu0 0.0
        %329 = vmatprep.subr.mxu0 0.0
        %330 = vmatpush1.msra.mxu0 0.0
        %331 = vmatprep.subr.mxu0 0.0
        %332 = vmatpush1.msra.mxu0 0.0
        %333 = vmatprep.subr.mxu0 0.0
        %334 = vmatpush1.msra.mxu0 0.0
        %335 = vmatprep.subr.mxu0 0.0
        %336 = vmatpush1.msra.mxu0 0.0
        %337 = vmatprep.subr.mxu0 0.0
        %338 = vmatpush1.msra.mxu0 0.0
        %339 = vmatprep.subr.mxu0 0.0
        %340 = vmatpush1.msra.mxu0 0.0
        %341 = vmatprep.subr.mxu0 0.0
        %342 = vmatpush1.msra.mxu0 0.0
        %343 = vmatprep.subr.mxu0 0.0
        %344 = vmatpush1.msra.mxu0 0.0
        %345 = vmatprep.subr.mxu0 0.0
        %346 = vmatpush1.msra.mxu0 0.0
        %347 = vmatprep.subr.mxu0 0.0
        %348 = vmatpush1.msra.mxu0 0.0
        %349 = vmatprep.subr.mxu0 0.0
        %350 = vmatpush1.msra.mxu0 0.0
        %351 = vmatprep.mubr.f32.mxu0 0.0
        %352 = vmatmul.mubr.f32.gmra.mrb[0].mxu0 %v242
        %v353 = vpop.f32.mrb[0].mxu0
        %v354 = vadd.f32 %v280, %v353
        %v355 = vpop.f32.mrb[0].mxu0
        %v356 = vadd.f32 %v284, %v355
        %357 = vdwg.mxu0
        %358 = vst [vmem:[%s222] sm:$0xff] %v354
        %359 = vst [vmem:[%s222 + $0x8] sm:$0xff] %v356
        %s360 = sand.u32 %s128, 1
        %s361 = scalar_lea.sflag [#allocation3], %s360
        %s362 = sand.u32 %s128, 1
        %s363 = smul.addr %s362, 16
        %s364 = scalar_lea.vmem [#allocation2], %s363
        // Predicated region
        $region33: #{rnn_model_forward.5} parent=31 // pred_check
          %p365 = pneg %p138
        $region34: #{rnn_model_forward.5} parent=31 // pred_check_branch
          %367 = sbr.rel (%p365) target = $region36
        $region35: #{rnn_model_forward.5} parent=31 // pred_region
          %s368 = smul.u32 2, %s24
          %s370 = ssub.s32 256, 256
          %371 = vsyncadd %s361, %s370
          %s372 = smul.addr %s23, 2
          %s373 = sadd.s32 %s368, %s372
          %s374 = smul.addr %s22, 2
          %s375 = sadd.s32 %s373, %s374
          %s376 = smul.addr %s375, 128
          %s377 = scalar_lea.hbm %s3, %s376
          %s379 = sshll.u32 %s364, 4
          %s380 = int_to_ptr.vmem [resolvable:$true] %s379
          %382 = dma.vmem_to_hbm [thread:$0]  %s380, 256, %s377, %s361
        $region36: #{rnn_model_forward.5} parent=31 // pred_fallthru
          _
      $region32: #{rnn_model_forward.5} parent=5 // pred_fallthru
        _
      %p383 = scmp.le.s32.totalorder 2, %s12
      // Predicated region
      $region37: #{rnn_model_forward.5} parent=5 // pred_check
        %p384 = pneg %p383
      $region38: #{rnn_model_forward.5} parent=5 // pred_check_branch
        %386 = sbr.rel (%p384) target = $region40
      $region39: #{rnn_model_forward.5} parent=5 // pred_region
        %s387 = ssub.s32 %s12, 2
        // Predicated region
        $region41: #{rnn_model_forward.5} parent=39 // pred_check
          %p388 = pneg %p144
        $region42: #{rnn_model_forward.5} parent=39 // pred_check_branch
          %390 = sbr.rel (%p388) target = $region44
        $region43: #{rnn_model_forward.5} parent=39 // pred_region
          %s391 = sand.u32 %s129, 1
          %s392 = scalar_lea.sflag [#allocation3], %s391
          %s393 = sand.u32 %s129, 1
          %s394 = smul.addr %s393, 16
          %s395 = scalar_lea.vmem [#allocation2], %s394
          %396 = dma.done %s392, 256
        $region44: #{rnn_model_forward.5} parent=39 // pred_fallthru
          _
      $region40: #{rnn_model_forward.5} parent=5 // pred_fallthru
        _
    $region6: #{rnn_model_forward.5} parent=1 // loop_footer
      %s16 = sadd.s32 1, %s12
    $region7: #{rnn_model_forward.5} parent=1 // loop_footer_branch
      %11 = sbr.rel target = $region3
    $region8: #{rnn_model_forward.5} parent=1 // loop_exit
      _
    %397 = vsyncpa [#allocation3], 1
    %s398 = scalar_lea.sflag [#allocation3], 1
    %399 = vsyncpa %s398, 1

// kernel: rnn_model_forward.3
$region0: #{rnn_model_forward.3}
  #allocation0 [shape = 'u32[]', space=smem, size = 0x4, offset = 0x4, fixed_abs, tag = 'smem constant byte address 0x4 - core index']
  #allocation1 [shape = 'u32[144,128]{1,0:T(1,128)}', space=vmem, size = 0x12000, scoped, tag = 'internal scratch']
  #allocation2 [shape = 'f32[16,256]{1,0:T(8,128)}', space=vmem, size = 0x4000, scoped, tag = 'scratch operand']
  %s0 = inlined_call_operand.vmem [shape: f32[16,128], index: 0, kind: input, shape index: {}]
  %s1 = inlined_call_operand.hbm [shape: f32[128,512], index: 1, kind: input, shape index: {}]
  %s2 = inlined_call_operand.vmem [shape: f32[1,512], index: 2, kind: input, shape index: {}]
  %s3 = inlined_call_operand.vmem [shape: f32[16,512], index: 3, kind: output, shape index: {}]
  %s4 = sld [smem:[#allocation0]]
  $region76: #{rnn_model_forward.3} parent=0
    _
  %s6 = ssub.s32 1, %s4
  %s7 = scalar_select 0, %s6, %s4
  $region1: #{rnn_model_forward.3} parent=0
    #allocation3 [shape = 'u8[262144]{0}', space=vmem, size = 0x40000, scoped, tag = 'input window, operand 1']
    #allocation4 [shape = 's32[2]{0}', space=sflag, size = 0x8, scoped, tag = 'scoped memory for rnn_model_forward.3']
    #allocation5 [shape = 'u8[32768]{0}', space=vmem, size = 0x8000, scoped, tag = 'output window, operand 0']
    %8 = vsyncpa [#allocation4], 0
    %s9 = scalar_lea.sflag [#allocation4], 1
    %10 = vsyncpa %s9, 0
    loop: start=0, step=1, limit=4
    $region2: #{rnn_model_forward.3} parent=1 // loop_pre_header
      _
    $region3: #{rnn_model_forward.3} parent=1 // loop_header
      %s12 = sphi 0, %s16
      %p13 = scmp.ge.s32.totalorder %s12, 4
      %s19 = sphi 0, %s38
      %s20 = sphi 0, %s34
      %s21 = sphi 0, %s30
      %s22 = sphi 0, %s19
      %s23 = sphi 0, %s20
      %s24 = sphi 0, %s21
      %s25 = sphi 0, %s22
      %s26 = sphi 0, %s23
      %s27 = sphi 0, %s24
      %s43 = sphi 0, %s45
      %s46 = sphi 0, %s43
      %s47 = sphi 0, %s46
      %s63 = sphi 0, %s47
      %s71 = sphi 0, %s73
      %s74 = sphi 0, %s71
      %s75 = sphi 0, %s74
      %s91 = sphi 0, %s75
      %s97 = sphi 0, %s99
      %s100 = sphi 0, %s97
      %s101 = sphi 0, %s100
      %s117 = sphi 0, %s101
      %s125 = sphi 0, %s127
      %s128 = sphi 0, %s125
      %s129 = sphi 0, %s128
      %s145 = sphi 0, %s129
    $region4: #{rnn_model_forward.3} parent=1 // loop_header_branch
      %15 = sbr.rel (%p13) target = $region8
    $region5: #{rnn_model_forward.3} parent=1 // loop_body
      %s17 = ssub.s32 %s12, 1
      %s18 = ssub.s32 %s12, 2
      %s28 = sadd.s32 1, %s21
      %p29 = scmp.ge.s32.totalorder %s28, 1
      %s30 = scalar_select %p29, 0, %s28
      %s31 = sadd.s32 1, %s20
      %s32 = scalar_select %p29, %s31, %s20
      %p33 = scmp.ge.s32.totalorder %s32, 2
      %s34 = scalar_select %p33, 0, %s32
      %s35 = sadd.s32 1, %s19
      %s36 = scalar_select %p33, %s35, %s19
      %p37 = scmp.ge.s32.totalorder %s36, 1
      %s38 = scalar_select %p37, 0, %s36
      %s39 = ssub.s32 %s19, %s38
      %s40 = ssub.s32 %s21, %s30
      %s41 = sor.u32 %s39, %s40
      %p42 = scmp.eq.s32.totalorder %s41, 0
      %s44 = sadd.s32 %s43, 1
      %s45 = scalar_select %p42, %s43, %s44
      %p48 = pneg %p42
      %p49 = scmp.eq.s32.totalorder %s12, 1
      %p50 = por %p48, %p49
      %p51 = scmp.ne.s32.totalorder %s43, %s46
      %p52 = scmp.eq.s32.totalorder %s12, 0
      %p53 = por %p51, %p52
      %p54 = scmp.ne.s32.totalorder %s43, %s46
      %p55 = scmp.eq.s32.totalorder %s17, 1
      %p56 = por %p54, %p55
      %p57 = scmp.ne.s32.totalorder %s46, %s47
      %p58 = scmp.eq.s32.totalorder %s17, 0
      %p59 = por %p57, %p58
      %p60 = scmp.ne.s32.totalorder %s46, %s47
      %p61 = scmp.eq.s32.totalorder %s18, 1
      %p62 = por %p60, %p61
      %p64 = scmp.ne.s32.totalorder %s47, %s63
      %p65 = scmp.eq.s32.totalorder %s18, 0
      %p66 = por %p64, %p65
      %s67 = ssub.s32 %s21, %s30
      %s68 = ssub.s32 %s20, %s34
      %s69 = sor.u32 %s67, %s68
      %p70 = scmp.eq.s32.totalorder %s69, 0
      %s72 = sadd.s32 %s71, 1
      %s73 = scalar_select %p70, %s71, %s72
      %p76 = pneg %p70
      %p77 = scmp.eq.s32.totalorder %s12, 1
      %p78 = por %p76, %p77
      %p79 = scmp.ne.s32.totalorder %s71, %s74
      %p80 = scmp.eq.s32.totalorder %s12, 0
      %p81 = por %p79, %p80
      %p82 = scmp.ne.s32.totalorder %s71, %s74
      %p83 = scmp.eq.s32.totalorder %s17, 1
      %p84 = por %p82, %p83
      %p85 = scmp.ne.s32.totalorder %s74, %s75
      %p86 = scmp.eq.s32.totalorder %s17, 0
      %p87 = por %p85, %p86
      %p88 = scmp.ne.s32.totalorder %s74, %s75
      %p89 = scmp.eq.s32.totalorder %s18, 1
      %p90 = por %p88, %p89
      %p92 = scmp.ne.s32.totalorder %s75, %s91
      %p93 = scmp.eq.s32.totalorder %s18, 0
      %p94 = por %p92, %p93
      %s95 = ssub.s32 %s20, %s34
      %p96 = scmp.eq.s32.totalorder %s95, 0
      %s98 = sadd.s32 %s97, 1
      %s99 = scalar_select %p96, %s97, %s98
      %p102 = pneg %p96
      %p103 = scmp.eq.s32.totalorder %s12, 1
      %p104 = por %p102, %p103
      %p105 = scmp.ne.s32.totalorder %s97, %s100
      %p106 = scmp.eq.s32.totalorder %s12, 0
      %p107 = por %p105, %p106
      %p108 = scmp.ne.s32.totalorder %s97, %s100
      %p109 = scmp.eq.s32.totalorder %s17, 1
      %p110 = por %p108, %p109
      %p111 = scmp.ne.s32.totalorder %s100, %s101
      %p112 = scmp.eq.s32.totalorder %s17, 0
      %p113 = por %p111, %p112
      %p114 = scmp.ne.s32.totalorder %s100, %s101
      %p115 = scmp.eq.s32.totalorder %s18, 1
      %p116 = por %p114, %p115
      %p118 = scmp.ne.s32.totalorder %s101, %s117
      %p119 = scmp.eq.s32.totalorder %s18, 0
      %p120 = por %p118, %p119
      %s121 = ssub.s32 %s19, %s38
      %s122 = ssub.s32 %s20, %s34
      %s123 = sor.u32 %s121, %s122
      %p124 = scmp.eq.s32.totalorder %s123, 0
      %s126 = sadd.s32 %s125, 1
      %s127 = scalar_select %p124, %s125, %s126
      %p130 = pneg %p124
      %p131 = scmp.eq.s32.totalorder %s12, 1
      %p132 = por %p130, %p131
      %p133 = scmp.ne.s32.totalorder %s125, %s128
      %p134 = scmp.eq.s32.totalorder %s12, 0
      %p135 = por %p133, %p134
      %p136 = scmp.ne.s32.totalorder %s125, %s128
      %p137 = scmp.eq.s32.totalorder %s17, 1
      %p138 = por %p136, %p137
      %p139 = scmp.ne.s32.totalorder %s128, %s129
      %p140 = scmp.eq.s32.totalorder %s17, 0
      %p141 = por %p139, %p140
      %p142 = scmp.ne.s32.totalorder %s128, %s129
      %p143 = scmp.eq.s32.totalorder %s18, 1
      %p144 = por %p142, %p143
      %p146 = scmp.ne.s32.totalorder %s129, %s145
      %p147 = scmp.eq.s32.totalorder %s18, 0
      %p148 = por %p146, %p147
      %p149 = scmp.le.s32.totalorder 1, %s12
      %p150 = scmp.lt.s32.totalorder %s12, 3
      %p151 = pnand %p149, %p150
      %p152 = pneg %p151
      // Predicated region
      $region9: #{rnn_model_forward.3} parent=5 // pred_check
        _
      $region10: #{rnn_model_forward.3} parent=5 // pred_check_branch
        %154 = sbr.rel (%p151) target = $region12
      $region11: #{rnn_model_forward.3} parent=5 // pred_region
        %s155 = ssub.s32 %s12, 1
        // Predicated region
        $region13: #{rnn_model_forward.3} parent=11 // pred_check
          %p156 = pneg %p59
        $region14: #{rnn_model_forward.3} parent=11 // pred_check_branch
          %158 = sbr.rel (%p156) target = $region16
        $region15: #{rnn_model_forward.3} parent=11 // pred_region
          %s159 = smul.u32 2, %s22
          %p160 = scmp.lt.s32.totalorder %s159, 1
          %s161 = scalar_select %p160, %s159, 1
          %p162 = scmp.lt.s32.totalorder %s24, 0
          %s163 = scalar_select %p162, %s24, 0
          %s164 = sadd.s32 %s163, %s161
          %s165 = smul.addr %s164, 8
          %s166 = scalar_lea.vmem %s0, %s165
          %s167 = smul.u32 2, %s22
        $region16: #{rnn_model_forward.3} parent=11 // pred_fallthru
          _
      $region12: #{rnn_model_forward.3} parent=5 // pred_fallthru
        _
      %p168 = scmp.lt.s32.totalorder %s12, 2
      // Predicated region
      $region17: #{rnn_model_forward.3} parent=5 // pred_check
        %p169 = pneg %p168
      $region18: #{rnn_model_forward.3} parent=5 // pred_check_branch
        %171 = sbr.rel (%p169) target = $region20
      $region19: #{rnn_model_forward.3} parent=5 // pred_region
        // Predicated region
        $region21: #{rnn_model_forward.3} parent=19 // pred_check
          %p172 = pneg %p81
        $region22: #{rnn_model_forward.3} parent=19 // pred_check_branch
          %174 = sbr.rel (%p172) target = $region24
        $region23: #{rnn_model_forward.3} parent=19 // pred_region
          %s175 = sand.u32 %s71, 1
          %s176 = scalar_lea.sflag [#allocation4], %s175
          %s177 = sand.u32 %s71, 1
          %s178 = smul.addr %s177, 256
          %s179 = scalar_lea.vmem [#allocation3], %s178
          %s180 = smul.u32 16, %s21
          %s181 = smul.u32 2, %s20
          %s183 = ssub.s32 4096, 4096
          %184 = vsyncadd %s176, %s183
          %s185 = smul.addr %s180, 4
          %s186 = sadd.s32 %s181, %s185
          %s187 = smul.addr %s186, 128
          %s188 = scalar_lea.hbm %s1, %s187
          %s189 = sshll.u32 %s179, 4
          %s190 = int_to_ptr.vmem [resolvable:$true] %s189
          %195 = dma.hbm_to_vmem [thread:$0]  %s188, 4096, %s190, %s176, 512, 256, 16
        $region24: #{rnn_model_forward.3} parent=19 // pred_fallthru
          _
        // Predicated region
        $region25: #{rnn_model_forward.3} parent=19 // pred_check
          %p196 = pneg %p107
        $region26: #{rnn_model_forward.3} parent=19 // pred_check_branch
          %198 = sbr.rel (%p196) target = $region28
        $region27: #{rnn_model_forward.3} parent=19 // pred_region
          %s199 = smul.u32 2, %s20
          %p200 = scmp.lt.s32.totalorder %s199, 3
          %s201 = scalar_select %p200, %s199, 3
          %s202 = scalar_lea.vmem %s2, %s201
          %s203 = smul.u32 2, %s20
        $region28: #{rnn_model_forward.3} parent=19 // pred_fallthru
          _
      $region20: #{rnn_model_forward.3} parent=5 // pred_fallthru
        _
      %p204 = scmp.le.s32.totalorder 1, %s12
      %p205 = scmp.lt.s32.totalorder %s12, 3
      %p206 = pnand %p204, %p205
      %p207 = pneg %p206
      // Predicated region
      $region29: #{rnn_model_forward.3} parent=5 // pred_check
        _
      $region30: #{rnn_model_forward.3} parent=5 // pred_check_branch
        %209 = sbr.rel (%p206) target = $region32
      $region31: #{rnn_model_forward.3} parent=5 // pred_region
        %s210 = ssub.s32 %s12, 1
        %s211 = sand.u32 %s74, 1
        %s212 = scalar_lea.sflag [#allocation4], %s211
        %s213 = sand.u32 %s74, 1
        %s214 = smul.addr %s213, 256
        %s215 = scalar_lea.vmem [#allocation3], %s214
        // Predicated region
        $region33: #{rnn_model_forward.3} parent=31 // pred_check
          %p216 = pneg %p87
        $region34: #{rnn_model_forward.3} parent=31 // pred_check_branch
          %218 = sbr.rel (%p216) target = $region36
        $region35: #{rnn_model_forward.3} parent=31 // pred_region
          %219 = dma.done %s212, 4096
        $region36: #{rnn_model_forward.3} parent=31 // pred_fallthru
          _
        %s220 = smul.u32 2, %s22
        %p221 = scmp.lt.s32.totalorder %s220, 1
        %s222 = scalar_select %p221, %s220, 1
        %p223 = scmp.lt.s32.totalorder %s24, 0
        %s224 = scalar_select %p223, %s24, 0
        %s225 = sadd.s32 %s224, %s222
        %s226 = smul.addr %s225, 8
        %s227 = scalar_lea.vmem %s0, %s226
        %p228 = pneg %p59
        %p229 = pneg %p56
        %s230 = sand.u32 %s74, 1
        %s231 = scalar_lea.sflag [#allocation4], %s230
        %s232 = sand.u32 %s74, 1
        %s233 = smul.addr %s232, 256
        %s234 = scalar_lea.vmem [#allocation3], %s233
        %p235 = pneg %p87
        %p236 = pneg %p84
        %s237 = smul.u32 2, %s23
        %p238 = scmp.lt.s32.totalorder %s237, 3
        %s239 = scalar_select %p238, %s237, 3
        %s240 = scalar_lea.vmem %s2, %s239
        %p241 = pneg %p113
        %p242 = pneg %p110
        %p243 = pneg %p141
        %p244 = pneg %p138
        %s245 = sand.u32 %s128, 1
        %s246 = sand.u32 %s128, 1
        %s247 = smul.addr %s246, 32
        %s248 = scalar_lea.vmem [#allocation5], %s247
        %s249 = smul.u32 2, %s22
        %p250 = scmp.lt.s32.totalorder %s249, 1
        %s251 = scalar_select %p250, %s249, 1
        %p252 = scmp.lt.s32.totalorder %s24, 0
        %s253 = scalar_select %p252, %s24, 0
        %s254 = sadd.s32 %s253, %s251
        %s255 = smul.addr %s254, 8
        %s256 = scalar_lea.vmem %s0, %s255
        %s257 = smul.u32 2, %s22
        %s258 = smul.u32 16, %s24
        %s259 = smul.u32 2, %s23
        %s260 = smul.u32 2, %s23
        %p261 = scmp.lt.s32.totalorder %s260, 3
        %s262 = scalar_select %p261, %s260, 3
        %s263 = scalar_lea.vmem %s2, %s262
        %s264 = smul.u32 2, %s23
        %s265 = smul.u32 2, %s22
        %s266 = smul.u32 2, %s23
        %p267 = scmp.eq.s32.totalorder %s24, 0
        // Predicated region
        $region37: #{rnn_model_forward.3} parent=31 // pred_check
          %p268 = pneg %p267
        $region38: #{rnn_model_forward.3} parent=31 // pred_check_branch
          %270 = sbr.rel (%p268) target = $region40
        $region39: #{rnn_model_forward.3} parent=31 // pred_region
          %271 = vst [vmem:[#allocation2] sm:$0xff] 0.0
          %272 = vst [vmem:[#allocation2 + $0x8] sm:$0xff] 0.0
          %273 = vst [vmem:[#allocation2 + $0x10] sm:$0xff] 0.0
          %274 = vst [vmem:[#allocation2 + $0x18] sm:$0xff] 0.0
        $region40: #{rnn_model_forward.3} parent=31 // pred_fallthru
          _
        %v275 = vld [vmem:[%s256] sm:$0xff]
        %v276 = vld [vmem:[%s256 + $0x8] sm:$0xff]
        %v277 = vld [vmem:[%s215] sm:$0xff]
        %v278 = vld [vmem:[%s215 + $0x8] sm:$0xff]
        %v279 = vld [vmem:[%s215 + $0x10] sm:$0xff]
        %v280 = vld [vmem:[%s215 + $0x18] sm:$0xff]
        %v281 = vld [vmem:[%s215 + $0x20] sm:$0xff]
        %v282 = vld [vmem:[%s215 + $0x28] sm:$0xff]
        %v283 = vld [vmem:[%s215 + $0x30] sm:$0xff]
        %v284 = vld [vmem:[%s215 + $0x38] sm:$0xff]
        %v285 = vld [vmem:[%s215 + $0x40] sm:$0xff]
        %v286 = vld [vmem:[%s215 + $0x48] sm:$0xff]
        %v287 = vld [vmem:[%s215 + $0x50] sm:$0xff]
        %v288 = vld [vmem:[%s215 + $0x58] sm:$0xff]
        %v289 = vld [vmem:[%s215 + $0x60] sm:$0xff]
        %v290 = vld [vmem:[%s215 + $0x68] sm:$0xff]
        %v291 = vld [vmem:[%s215 + $0x70] sm:$0xff]
        %v292 = vld [vmem:[%s215 + $0x78] sm:$0xff]
        %v293 = vld [vmem:[%s215 + $0x80] sm:$0xff]
        %v294 = vld [vmem:[%s215 + $0x88] sm:$0xff]
        %v295 = vld [vmem:[%s215 + $0x90] sm:$0xff]
        %v296 = vld [vmem:[%s215 + $0x98] sm:$0xff]
        %v297 = vld [vmem:[%s215 + $0xa0] sm:$0xff]
        %v298 = vld [vmem:[%s215 + $0xa8] sm:$0xff]
        %v299 = vld [vmem:[%s215 + $0xb0] sm:$0xff]
        %v300 = vld [vmem:[%s215 + $0xb8] sm:$0xff]
        %v301 = vld [vmem:[%s215 + $0xc0] sm:$0xff]
        %v302 = vld [vmem:[%s215 + $0xc8] sm:$0xff]
        %v303 = vld [vmem:[%s215 + $0xd0] sm:$0xff]
        %v304 = vld [vmem:[%s215 + $0xd8] sm:$0xff]
        %v305 = vld [vmem:[%s215 + $0xe0] sm:$0xff]
        %v306 = vld [vmem:[%s215 + $0xe8] sm:$0xff]
        %v307 = vld [vmem:[%s215 + $0xf0] sm:$0xff]
        %v308 = vld [vmem:[%s215 + $0xf8] sm:$0xff]
        %v309 = vld [vmem:[#allocation2] sm:$0xff]
        %v310 = vld [vmem:[#allocation2 + $0x8] sm:$0xff]
        %v311 = vld [vmem:[#allocation2 + $0x10] sm:$0xff]
        %v312 = vld [vmem:[#allocation2 + $0x18] sm:$0xff]
        %313 = vmatprep.subr.mxu0 %v278
        %314 = vmatpush1.msra.mxu0 %v277
        %315 = vmatprep.subr.mxu0 %v280
        %316 = vmatpush1.msra.mxu0 %v279
        %317 = vmatprep.subr.mxu0 %v282
        %318 = vmatpush1.msra.mxu0 %v281
        %319 = vmatprep.subr.mxu0 %v284
        %320 = vmatpush1.msra.mxu0 %v283
        %321 = vmatprep.subr.mxu0 %v286
        %322 = vmatpush1.msra.mxu0 %v285
        %323 = vmatprep.subr.mxu0 %v288
        %324 = vmatpush1.msra.mxu0 %v287
        %325 = vmatprep.subr.mxu0 %v290
        %326 = vmatpush1.msra.mxu0 %v289
        %327 = vmatprep.subr.mxu0 %v292
        %328 = vmatpush1.msra.mxu0 %v291
        %329 = vmatprep.subr.mxu0 %v294
        %330 = vmatpush1.msra.mxu0 %v293
        %331 = vmatprep.subr.mxu0 %v296
        %332 = vmatpush1.msra.mxu0 %v295
        %333 = vmatprep.subr.mxu0 %v298
        %334 = vmatpush1.msra.mxu0 %v297
        %335 = vmatprep.subr.mxu0 %v300
        %336 = vmatpush1.msra.mxu0 %v299
        %337 = vmatprep.subr.mxu0 %v302
        %338 = vmatpush1.msra.mxu0 %v301
        %339 = vmatprep.subr.mxu0 %v304
        %340 = vmatpush1.msra.mxu0 %v303
        %341 = vmatprep.subr.mxu0 %v306
        %342 = vmatpush1.msra.mxu0 %v305
        %343 = vmatprep.subr.mxu0 %v308
        %344 = vmatpush1.msra.mxu0 %v307
        %345 = vmatprep.subr.mxu0 0.0
        %346 = vmatpush1.msra.mxu0 0.0
        %347 = vmatprep.subr.mxu0 0.0
        %348 = vmatpush1.msra.mxu0 0.0
        %349 = vmatprep.subr.mxu0 0.0
        %350 = vmatpush1.msra.mxu0 0.0
        %351 = vmatprep.subr.mxu0 0.0
        %352 = vmatpush1.msra.mxu0 0.0
        %353 = vmatprep.subr.mxu0 0.0
        %354 = vmatpush1.msra.mxu0 0.0
        %355 = vmatprep.subr.mxu0 0.0
        %356 = vmatpush1.msra.mxu0 0.0
        %357 = vmatprep.subr.mxu0 0.0
        %358 = vmatpush1.msra.mxu0 0.0
        %359 = vmatprep.subr.mxu0 0.0
        %360 = vmatpush1.msra.mxu0 0.0
        %361 = vmatprep.subr.mxu0 0.0
        %362 = vmatpush1.msra.mxu0 0.0
        %363 = vmatprep.subr.mxu0 0.0
        %364 = vmatpush1.msra.mxu0 0.0
        %365 = vmatprep.subr.mxu0 0.0
        %366 = vmatpush1.msra.mxu0 0.0
        %367 = vmatprep.subr.mxu0 0.0
        %368 = vmatpush1.msra.mxu0 0.0
        %369 = vmatprep.subr.mxu0 0.0
        %370 = vmatpush1.msra.mxu0 0.0
        %371 = vmatprep.subr.mxu0 0.0
        %372 = vmatpush1.msra.mxu0 0.0
        %373 = vmatprep.subr.mxu0 0.0
        %374 = vmatpush1.msra.mxu0 0.0
        %375 = vmatprep.subr.mxu0 0.0
        %376 = vmatpush1.msra.mxu0 0.0
        %377 = vmatprep.mubr.f32.mxu0 0.0
        %378 = vmatmul.mubr.f32.gmra.mrb[0].mxu0 %v275
        %v379 = vpop.f32.mrb[0].mxu0
        %v380 = vadd.f32 0.0, %v379
        %v381 = vpop.f32.mrb[0].mxu0
        %v382 = vadd.f32 0.0, %v381
        %383 = vmatprep.mubr.f32.mxu0 0.0
        %384 = vmatmul.mubr.f32.gmra.mrb[0].mxu0 %v276
        %v385 = vpop.f32.mrb[0].mxu0
        %v386 = vadd.f32 0.0, %v385
        %v387 = vpop.f32.mrb[0].mxu0
        %v388 = vadd.f32 0.0, %v387
        %389 = vdwg.mxu0
        %v390 = vadd.f32 %v309, %v380
        %v391 = vadd.f32 %v310, %v382
        %v392 = vadd.f32 %v311, %v386
        %v393 = vadd.f32 %v312, %v388
        %394 = vst [vmem:[#allocation2] sm:$0xff] %v390
        %395 = vst [vmem:[#allocation2 + $0x8] sm:$0xff] %v391
        %396 = vst [vmem:[#allocation2 + $0x10] sm:$0xff] %v392
        %397 = vst [vmem:[#allocation2 + $0x18] sm:$0xff] %v393
        // Predicated region
        $region41: #{rnn_model_forward.3} parent=31 // pred_check
          %p398 = pneg %p267
        $region42: #{rnn_model_forward.3} parent=31 // pred_check_branch
          %400 = sbr.rel (%p398) target = $region44
        $region43: #{rnn_model_forward.3} parent=31 // pred_region
          %v401 = vld [vmem:[#allocation2] sm:$0xff]
          %v402 = vld [vmem:[#allocation2 + $0x8] sm:$0xff]
          %v403 = vld [vmem:[#allocation2 + $0x10] sm:$0xff]
          %v404 = vld [vmem:[#allocation2 + $0x18] sm:$0xff]
          %v405 = vld [vmem:[%s263] sm:$0x3]
          %v407 = vlaneseq
          %v408 = vshrl.u32 %v407, 7
          %v409 = vsub.s32 0, %v408
          %v410 = vrot.slane %v405, %v409
          %v411 = vlaneseq
          %v412 = vshrl.u32 %v411, 7
          %v413 = vsub.s32 1, %v412
          %v414 = vrot.slane %v405, %v413
          %v417 = vadd.f32 %v401, %v410
          %v418 = vadd.f32 %v402, %v414
          %v419 = vadd.f32 %v403, %v410
          %v420 = vadd.f32 %v404, %v414
          %421 = vst [vmem:[%s248] sm:$0xff] %v417
          %422 = vst [vmem:[%s248 + $0x8] sm:$0xff] %v418
          %423 = vst [vmem:[%s248 + $0x10] sm:$0xff] %v419
          %424 = vst [vmem:[%s248 + $0x18] sm:$0xff] %v420
        $region44: #{rnn_model_forward.3} parent=31 // pred_fallthru
          _
        %s425 = sand.u32 %s128, 1
        %s426 = sand.u32 %s128, 1
        %s427 = smul.addr %s426, 32
        %s428 = scalar_lea.vmem [#allocation5], %s427
        // Predicated region
        $region45: #{rnn_model_forward.3} parent=31 // pred_check
          %p429 = pneg %p138
        $region46: #{rnn_model_forward.3} parent=31 // pred_check_branch
          %431 = sbr.rel (%p429) target = $region48
        $region47: #{rnn_model_forward.3} parent=31 // pred_region
          %s432 = smul.u32 2, %s22
          %s433 = smul.u32 2, %s23
          %s434 = smul.addr %s432, 4
          %s435 = sadd.s32 %s433, %s434
          %s436 = smul.addr %s435, 8
          %s437 = scalar_lea.vmem %s3, %s436
          // Predicated region
          $region49: #{rnn_model_forward.3} parent=47 // pred_check
            _
          $region50: #{rnn_model_forward.3} parent=47 // pred_check_branch
            %439 = sbr.rel (0) target = $region52
          $region51: #{rnn_model_forward.3} parent=47 // pred_region
            // Predicated region
            $region53: #{rnn_model_forward.3} parent=51 // pred_check
              _
            $region54: #{rnn_model_forward.3} parent=51 // pred_check_branch
              %441 = sbr.rel (0) target = $region56
            $region55: #{rnn_model_forward.3} parent=51 // pred_region
              loop: start=0, step=1, limit=1
              $region57: #{rnn_model_forward.3} parent=55 // loop_pre_header
                _
              $region58: #{rnn_model_forward.3} parent=55 // loop_header
                %s443 = sphi 0, %s447
                %p444 = scmp.ge.s32.totalorder %s443, 1
                %s448 = sphi %s428, %s428
                %s449 = sphi %s437, %s437
              $region59: #{rnn_model_forward.3} parent=55 // loop_header_branch
                %446 = sbr.rel (%p444) target = $region63
              $region60: #{rnn_model_forward.3} parent=55 // loop_body
                %v450 = vld [vmem:[%s448] sm:$0xff]
                %451 = vst [vmem:[%s449] sm:$0xff] %v450
                %v452 = vld [vmem:[%s448 + $0x8] sm:$0xff]
                %453 = vst [vmem:[%s449 + $0x8] sm:$0xff] %v452
                %v454 = vld [vmem:[%s448 + $0x10] sm:$0xff]
                %455 = vst [vmem:[%s449 + $0x20] sm:$0xff] %v454
                %v456 = vld [vmem:[%s448 + $0x18] sm:$0xff]
                %457 = vst [vmem:[%s449 + $0x28] sm:$0xff] %v456
              $region61: #{rnn_model_forward.3} parent=55 // loop_footer
                %s447 = sadd.s32 1, %s443
              $region62: #{rnn_model_forward.3} parent=55 // loop_footer_branch
                %442 = sbr.rel target = $region58
              $region63: #{rnn_model_forward.3} parent=55 // loop_exit
                _
            $region56: #{rnn_model_forward.3} parent=51 // pred_fallthru
              _
            // Predicated region
            $region64: #{rnn_model_forward.3} parent=51 // pred_check
              _
            $region65: #{rnn_model_forward.3} parent=51 // pred_check_branch
              %459 = sbr.rel target = $region67
            $region66: #{rnn_model_forward.3} parent=51 // pred_region
              _
            $region67: #{rnn_model_forward.3} parent=51 // pred_fallthru
              _
          $region52: #{rnn_model_forward.3} parent=47 // pred_fallthru
            _
          %460 = vnop
        $region48: #{rnn_model_forward.3} parent=31 // pred_fallthru
          _
      $region32: #{rnn_model_forward.3} parent=5 // pred_fallthru
        _
      %p461 = scmp.le.s32.totalorder 2, %s12
      // Predicated region
      $region68: #{rnn_model_forward.3} parent=5 // pred_check
        %p462 = pneg %p461
      $region69: #{rnn_model_forward.3} parent=5 // pred_check_branch
        %464 = sbr.rel (%p462) target = $region71
      $region70: #{rnn_model_forward.3} parent=5 // pred_region
        %s465 = ssub.s32 %s12, 2
        // Predicated region
        $region72: #{rnn_model_forward.3} parent=70 // pred_check
          %p466 = pneg %p144
        $region73: #{rnn_model_forward.3} parent=70 // pred_check_branch
          %468 = sbr.rel (%p466) target = $region75
        $region74: #{rnn_model_forward.3} parent=70 // pred_region
          %s469 = sand.u32 %s129, 1
          %s470 = sand.u32 %s129, 1
          %s471 = smul.addr %s470, 32
          %s472 = scalar_lea.vmem [#allocation5], %s471
        $region75: #{rnn_model_forward.3} parent=70 // pred_fallthru
          _
      $region71: #{rnn_model_forward.3} parent=5 // pred_fallthru
        _
    $region6: #{rnn_model_forward.3} parent=1 // loop_footer
      %s16 = sadd.s32 1, %s12
    $region7: #{rnn_model_forward.3} parent=1 // loop_footer_branch
      %11 = sbr.rel target = $region3
    $region8: #{rnn_model_forward.3} parent=1 // loop_exit
      _
    %473 = vsyncpa [#allocation4], 1
    %s474 = scalar_lea.sflag [#allocation4], 1
    %475 = vsyncpa %s474, 1

// kernel: rnn_model_forward.4
$region0: #{rnn_model_forward.4}
  #allocation0 [shape = 'u32[]', space=smem, size = 0x4, offset = 0x4, fixed_abs, tag = 'smem constant byte address 0x4 - core index']
  #allocation1 [shape = 'u32[144,128]{1,0:T(1,128)}', space=vmem, size = 0x12000, scoped, tag = 'internal scratch']
  #allocation2 [shape = 'f32[8,128]{1,0:T(8,128)}', space=vmem, size = 0x1000, scoped, tag = 'scratch operand']
  #allocation3 [shape = 'f32[8,128]{1,0:T(8,128)}', space=vmem, size = 0x1000, scoped, tag = 'scratch operand']
  #allocation4 [shape = 'f32[8,8,128]{2,1,0:T(8,128)}', space=vmem, size = 0x8000, scoped, tag = 'scratch operand']
  %s0 = inlined_call_operand.vmem [shape: f32[8,8,512], index: 0, kind: input, shape index: {}]
  %s1 = inlined_call_operand.vmem [shape: f32[128,512], index: 1, kind: input, shape index: {}]
  %s2 = inlined_call_operand.vmem [shape: f32[8,8,128], index: 2, kind: output, shape index: {}]
  %s3 = sld [smem:[#allocation0]]
  $region29: #{rnn_model_forward.4} parent=0
    _
  %s5 = ssub.s32 1, %s3
  %s6 = scalar_select 0, %s5, %s3
  // Predicated region
  $region2: #{rnn_model_forward.4} parent=0 // pred_check
    _
  $region3: #{rnn_model_forward.4} parent=0 // pred_check_branch
    %8 = sbr.rel (0) target = $region5
  $region4: #{rnn_model_forward.4} parent=0 // pred_region
    _
  $region5: #{rnn_model_forward.4} parent=0 // pred_fallthru
    _
  // Predicated region
  $region6: #{rnn_model_forward.4} parent=0 // pred_check
    _
  $region7: #{rnn_model_forward.4} parent=0 // pred_check_branch
    %10 = sbr.rel (0) target = $region9
  $region8: #{rnn_model_forward.4} parent=0 // pred_region
    _
  $region9: #{rnn_model_forward.4} parent=0 // pred_fallthru
    _
  %p11 = scmp.eq.s32.totalorder 0, 0
  // Predicated region
  $region10: #{rnn_model_forward.4} parent=0 // pred_check
    %p12 = pneg %p11
  $region11: #{rnn_model_forward.4} parent=0 // pred_check_branch
    %14 = sbr.rel (%p12) target = $region13
  $region12: #{rnn_model_forward.4} parent=0 // pred_region
    %15 = vst [vmem:[#allocation2] sm:$0xff] 0.0
    %16 = vst [vmem:[#allocation3] sm:$0xff] 0.0
  $region13: #{rnn_model_forward.4} parent=0 // pred_fallthru
    _
  loop: start=0, step=1, limit=8
  $region14: #{rnn_model_forward.4} parent=0 // loop_pre_header
    _
  $region15: #{rnn_model_forward.4} parent=0 // loop_header
    %s18 = sphi 0, %s22
    %p19 = scmp.ge.s32.totalorder %s18, 8
  $region16: #{rnn_model_forward.4} parent=0 // loop_header_branch
    %21 = sbr.rel (%p19) target = $region20
  $region17: #{rnn_model_forward.4} parent=0 // loop_body
    %s23 = smul.u32 %s18, 4
    %s24 = smul.addr %s23, 8
    %s25 = scalar_lea.vmem %s0, %s24
    %v26 = vld [vmem:[%s25] sm:$0xff]
    %v27 = vld [vmem:[%s25 + $0x8] sm:$0xff]
    %v28 = vld [vmem:[%s25 + $0x10] sm:$0xff]
    %v29 = vld [vmem:[%s25 + $0x18] sm:$0xff]
    %v30 = vld [vmem:[#allocation2] sm:$0xff]
    %v31 = vld [vmem:[%s1] sm:$0xff]
    %v32 = vld [vmem:[%s1 + $0x8] sm:$0xff]
    %v33 = vld [vmem:[%s1 + $0x10] sm:$0xff]
    %v34 = vld [vmem:[%s1 + $0x18] sm:$0xff]
    %v35 = vld [vmem:[%s1 + $0x20] sm:$0xff]
    %v36 = vld [vmem:[%s1 + $0x28] sm:$0xff]
    %v37 = vld [vmem:[%s1 + $0x30] sm:$0xff]
    %v38 = vld [vmem:[%s1 + $0x38] sm:$0xff]
    %v39 = vld [vmem:[%s1 + $0x40] sm:$0xff]
    %v40 = vld [vmem:[%s1 + $0x48] sm:$0xff]
    %v41 = vld [vmem:[%s1 + $0x50] sm:$0xff]
    %v42 = vld [vmem:[%s1 + $0x58] sm:$0xff]
    %v43 = vld [vmem:[%s1 + $0x60] sm:$0xff]
    %v44 = vld [vmem:[%s1 + $0x68] sm:$0xff]
    %v45 = vld [vmem:[%s1 + $0x70] sm:$0xff]
    %v46 = vld [vmem:[%s1 + $0x78] sm:$0xff]
    %v47 = vld [vmem:[%s1 + $0x80] sm:$0xff]
    %v48 = vld [vmem:[%s1 + $0x88] sm:$0xff]
    %v49 = vld [vmem:[%s1 + $0x90] sm:$0xff]
    %v50 = vld [vmem:[%s1 + $0x98] sm:$0xff]
    %v51 = vld [vmem:[%s1 + $0xa0] sm:$0xff]
    %v52 = vld [vmem:[%s1 + $0xa8] sm:$0xff]
    %v53 = vld [vmem:[%s1 + $0xb0] sm:$0xff]
    %v54 = vld [vmem:[%s1 + $0xb8] sm:$0xff]
    %v55 = vld [vmem:[%s1 + $0xc0] sm:$0xff]
    %v56 = vld [vmem:[%s1 + $0xc8] sm:$0xff]
    %v57 = vld [vmem:[%s1 + $0xd0] sm:$0xff]
    %v58 = vld [vmem:[%s1 + $0xd8] sm:$0xff]
    %v59 = vld [vmem:[%s1 + $0xe0] sm:$0xff]
    %v60 = vld [vmem:[%s1 + $0xe8] sm:$0xff]
    %v61 = vld [vmem:[%s1 + $0xf0] sm:$0xff]
    %v62 = vld [vmem:[%s1 + $0xf8] sm:$0xff]
    %v63 = vld [vmem:[%s1 + $0x100] sm:$0xff]
    %v64 = vld [vmem:[%s1 + $0x108] sm:$0xff]
    %v65 = vld [vmem:[%s1 + $0x110] sm:$0xff]
    %v66 = vld [vmem:[%s1 + $0x118] sm:$0xff]
    %v67 = vld [vmem:[%s1 + $0x120] sm:$0xff]
    %v68 = vld [vmem:[%s1 + $0x128] sm:$0xff]
    %v69 = vld [vmem:[%s1 + $0x130] sm:$0xff]
    %v70 = vld [vmem:[%s1 + $0x138] sm:$0xff]
    %v71 = vld [vmem:[%s1 + $0x140] sm:$0xff]
    %v72 = vld [vmem:[%s1 + $0x148] sm:$0xff]
    %v73 = vld [vmem:[%s1 + $0x150] sm:$0xff]
    %v74 = vld [vmem:[%s1 + $0x158] sm:$0xff]
    %v75 = vld [vmem:[%s1 + $0x160] sm:$0xff]
    %v76 = vld [vmem:[%s1 + $0x168] sm:$0xff]
    %v77 = vld [vmem:[%s1 + $0x170] sm:$0xff]
    %v78 = vld [vmem:[%s1 + $0x178] sm:$0xff]
    %v79 = vld [vmem:[%s1 + $0x180] sm:$0xff]
    %v80 = vld [vmem:[%s1 + $0x188] sm:$0xff]
    %v81 = vld [vmem:[%s1 + $0x190] sm:$0xff]
    %v82 = vld [vmem:[%s1 + $0x198] sm:$0xff]
    %v83 = vld [vmem:[%s1 + $0x1a0] sm:$0xff]
    %v84 = vld [vmem:[%s1 + $0x1a8] sm:$0xff]
    %v85 = vld [vmem:[%s1 + $0x1b0] sm:$0xff]
    %v86 = vld [vmem:[%s1 + $0x1b8] sm:$0xff]
    %v87 = vld [vmem:[%s1 + $0x1c0] sm:$0xff]
    %v88 = vld [vmem:[%s1 + $0x1c8] sm:$0xff]
    %v89 = vld [vmem:[%s1 + $0x1d0] sm:$0xff]
    %v90 = vld [vmem:[%s1 + $0x1d8] sm:$0xff]
    %v91 = vld [vmem:[%s1 + $0x1e0] sm:$0xff]
    %v92 = vld [vmem:[%s1 + $0x1e8] sm:$0xff]
    %v93 = vld [vmem:[%s1 + $0x1f0] sm:$0xff]
    %v94 = vld [vmem:[%s1 + $0x1f8] sm:$0xff]
    %95 = vmatprep.subr.mxu0 %v32
    %96 = vmatpush1.msra.mxu0 %v31
    %97 = vmatprep.subr.mxu0 %v36
    %98 = vmatpush1.msra.mxu0 %v35
    %99 = vmatprep.subr.mxu0 %v40
    %100 = vmatpush1.msra.mxu0 %v39
    %101 = vmatprep.subr.mxu0 %v44
    %102 = vmatpush1.msra.mxu0 %v43
    %103 = vmatprep.subr.mxu0 %v48
    %104 = vmatpush1.msra.mxu0 %v47
    %105 = vmatprep.subr.mxu0 %v52
    %106 = vmatpush1.msra.mxu0 %v51
    %107 = vmatprep.subr.mxu0 %v56
    %108 = vmatpush1.msra.mxu0 %v55
    %109 = vmatprep.subr.mxu0 %v60
    %110 = vmatpush1.msra.mxu0 %v59
    %111 = vmatprep.subr.mxu0 %v64
    %112 = vmatpush1.msra.mxu0 %v63
    %113 = vmatprep.subr.mxu0 %v68
    %114 = vmatpush1.msra.mxu0 %v67
    %115 = vmatprep.subr.mxu0 %v72
    %116 = vmatpush1.msra.mxu0 %v71
    %117 = vmatprep.subr.mxu0 %v76
    %118 = vmatpush1.msra.mxu0 %v75
    %119 = vmatprep.subr.mxu0 %v80
    %120 = vmatpush1.msra.mxu0 %v79
    %121 = vmatprep.subr.mxu0 %v84
    %122 = vmatpush1.msra.mxu0 %v83
    %123 = vmatprep.subr.mxu0 %v88
    %124 = vmatpush1.msra.mxu0 %v87
    %125 = vmatprep.subr.mxu0 %v92
    %126 = vmatpush1.msra.mxu0 %v91
    %127 = vmatprep.subr.mxu0 0.0
    %128 = vmatpush1.msra.mxu0 0.0
    %129 = vmatprep.subr.mxu0 0.0
    %130 = vmatpush1.msra.mxu0 0.0
    %131 = vmatprep.subr.mxu0 0.0
    %132 = vmatpush1.msra.mxu0 0.0
    %133 = vmatprep.subr.mxu0 0.0
    %134 = vmatpush1.msra.mxu0 0.0
    %135 = vmatprep.subr.mxu0 0.0
    %136 = vmatpush1.msra.mxu0 0.0
    %137 = vmatprep.subr.mxu0 0.0
    %138 = vmatpush1.msra.mxu0 0.0
    %139 = vmatprep.subr.mxu0 0.0
    %140 = vmatpush1.msra.mxu0 0.0
    %141 = vmatprep.subr.mxu0 0.0
    %142 = vmatpush1.msra.mxu0 0.0
    %143 = vmatprep.subr.mxu0 0.0
    %144 = vmatpush1.msra.mxu0 0.0
    %145 = vmatprep.subr.mxu0 0.0
    %146 = vmatpush1.msra.mxu0 0.0
    %147 = vmatprep.subr.mxu0 0.0
    %148 = vmatpush1.msra.mxu0 0.0
    %149 = vmatprep.subr.mxu0 0.0
    %150 = vmatpush1.msra.mxu0 0.0
    %151 = vmatprep.subr.mxu0 0.0
    %152 = vmatpush1.msra.mxu0 0.0
    %153 = vmatprep.subr.mxu0 0.0
    %154 = vmatpush1.msra.mxu0 0.0
    %155 = vmatprep.subr.mxu0 0.0
    %156 = vmatpush1.msra.mxu0 0.0
    %157 = vmatprep.subr.mxu0 0.0
    %158 = vmatpush1.msra.mxu0 0.0
    %159 = vmatprep.mubr.f32.mxu0 0.0
    %160 = vmatmul.mubr.f32.gmra.mrb[0].mxu0 %v30
    %v161 = vpop.f32.mrb[0].mxu0
    %v162 = vadd.f32 0.0, %v161
    %v163 = vpop.f32.mrb[0].mxu0
    %v164 = vadd.f32 0.0, %v163
    %165 = vdwg.mxu0
    %166 = vmatprep.subr.mxu0 %v34
    %167 = vmatpush1.msra.mxu0 %v33
    %168 = vmatprep.subr.mxu0 %v38
    %169 = vmatpush1.msra.mxu0 %v37
    %170 = vmatprep.subr.mxu0 %v42
    %171 = vmatpush1.msra.mxu0 %v41
    %172 = vmatprep.subr.mxu0 %v46
    %173 = vmatpush1.msra.mxu0 %v45
    %174 = vmatprep.subr.mxu0 %v50
    %175 = vmatpush1.msra.mxu0 %v49
    %176 = vmatprep.subr.mxu0 %v54
    %177 = vmatpush1.msra.mxu0 %v53
    %178 = vmatprep.subr.mxu0 %v58
    %179 = vmatpush1.msra.mxu0 %v57
    %180 = vmatprep.subr.mxu0 %v62
    %181 = vmatpush1.msra.mxu0 %v61
    %182 = vmatprep.subr.mxu0 %v66
    %183 = vmatpush1.msra.mxu0 %v65
    %184 = vmatprep.subr.mxu0 %v70
    %185 = vmatpush1.msra.mxu0 %v69
    %186 = vmatprep.subr.mxu0 %v74
    %187 = vmatpush1.msra.mxu0 %v73
    %188 = vmatprep.subr.mxu0 %v78
    %189 = vmatpush1.msra.mxu0 %v77
    %190 = vmatprep.subr.mxu0 %v82
    %191 = vmatpush1.msra.mxu0 %v81
    %192 = vmatprep.subr.mxu0 %v86
    %193 = vmatpush1.msra.mxu0 %v85
    %194 = vmatprep.subr.mxu0 %v90
    %195 = vmatpush1.msra.mxu0 %v89
    %196 = vmatprep.subr.mxu0 %v94
    %197 = vmatpush1.msra.mxu0 %v93
    %198 = vmatprep.subr.mxu0 0.0
    %199 = vmatpush1.msra.mxu0 0.0
    %200 = vmatprep.subr.mxu0 0.0
    %201 = vmatpush1.msra.mxu0 0.0
    %202 = vmatprep.subr.mxu0 0.0
    %203 = vmatpush1.msra.mxu0 0.0
    %204 = vmatprep.subr.mxu0 0.0
    %205 = vmatpush1.msra.mxu0 0.0
    %206 = vmatprep.subr.mxu0 0.0
    %207 = vmatpush1.msra.mxu0 0.0
    %208 = vmatprep.subr.mxu0 0.0
    %209 = vmatpush1.msra.mxu0 0.0
    %210 = vmatprep.subr.mxu0 0.0
    %211 = vmatpush1.msra.mxu0 0.0
    %212 = vmatprep.subr.mxu0 0.0
    %213 = vmatpush1.msra.mxu0 0.0
    %214 = vmatprep.subr.mxu0 0.0
    %215 = vmatpush1.msra.mxu0 0.0
    %216 = vmatprep.subr.mxu0 0.0
    %217 = vmatpush1.msra.mxu0 0.0
    %218 = vmatprep.subr.mxu0 0.0
    %219 = vmatpush1.msra.mxu0 0.0
    %220 = vmatprep.subr.mxu0 0.0
    %221 = vmatpush1.msra.mxu0 0.0
    %222 = vmatprep.subr.mxu0 0.0
    %223 = vmatpush1.msra.mxu0 0.0
    %224 = vmatprep.subr.mxu0 0.0
    %225 = vmatpush1.msra.mxu0 0.0
    %226 = vmatprep.subr.mxu0 0.0
    %227 = vmatpush1.msra.mxu0 0.0
    %228 = vmatprep.subr.mxu0 0.0
    %229 = vmatpush1.msra.mxu0 0.0
    %230 = vmatprep.mubr.f32.mxu0 0.0
    %231 = vmatmul.mubr.f32.gmra.mrb[0].mxu0 %v30
    %v232 = vpop.f32.mrb[0].mxu0
    %v233 = vadd.f32 0.0, %v232
    %v234 = vpop.f32.mrb[0].mxu0
    %v235 = vadd.f32 0.0, %v234
    %236 = vdwg.mxu0
    %v237 = vadd.f32 %v26, %v162
    %v238 = vadd.f32 %v27, %v164
    %v239 = vadd.f32 %v28, %v233
    %v240 = vadd.f32 %v29, %v235
    %v241 = vxor.u32 %v237, 2147483648
    %v242 = vmul.f32 %v241, 1.442695
    %v243 = vpow.pop %v242
    %v244 = vadd.f32 %v243, 1.0
    %v245 = vrcp.pop %v244
    %v246 = vmul.f32 1.0, %v245
    %v247 = vxor.u32 %v238, 2147483648
    %v248 = vmul.f32 %v247, 1.442695
    %v249 = vpow.pop %v248
    %v250 = vadd.f32 %v249, 1.0
    %v251 = vrcp.pop %v250
    %v252 = vmul.f32 1.0, %v251
    %v253 = vtanh.pop %v239
    %v254 = vxor.u32 %v240, 2147483648
    %v255 = vmul.f32 %v254, 1.442695
    %v256 = vpow.pop %v255
    %v257 = vadd.f32 %v256, 1.0
    %v258 = vrcp.pop %v257
    %v259 = vmul.f32 1.0, %v258
    %v260 = vld [vmem:[#allocation3] sm:$0xff]
    %v261 = vmul.f32 %v252, %v260
    %v262 = vmul.f32 %v246, %v253
    %v263 = vadd.f32 %v261, %v262
    %v264 = vtanh.pop %v263
    %v265 = vmul.f32 %v259, %v264
    %266 = vst [vmem:[#allocation3] sm:$0xff] %v263
    %267 = vst [vmem:[#allocation2] sm:$0xff] %v265
    %s268 = smul.u32 %s18, 8
    %s269 = scalar_lea.vmem [#allocation4], %s268
    %270 = vst [vmem:[%s269] sm:$0xff] %v265
  $region18: #{rnn_model_forward.4} parent=0 // loop_footer
    %s22 = sadd.s32 1, %s18
  $region19: #{rnn_model_forward.4} parent=0 // loop_footer_branch
    %17 = sbr.rel target = $region15
  $region20: #{rnn_model_forward.4} parent=0 // loop_exit
    _
  %v271 = vld [vmem:[#allocation4] sm:$0xff]
  %v272 = vld [vmem:[#allocation4 + $0x8] sm:$0xff]
  %v273 = vld [vmem:[#allocation4 + $0x10] sm:$0xff]
  %v274 = vld [vmem:[#allocation4 + $0x18] sm:$0xff]
  %v275 = vld [vmem:[#allocation4 + $0x20] sm:$0xff]
  %v276 = vld [vmem:[#allocation4 + $0x28] sm:$0xff]
  %v277 = vld [vmem:[#allocation4 + $0x30] sm:$0xff]
  %v278 = vld [vmem:[#allocation4 + $0x38] sm:$0xff]
  %v279 = vcombine.low %v271, %v273
  %v280 = vcombine.high %v271, %v273
  %v282 = vunpack.c.l.s4 1983009808
  %v283 = vunpack.c.0.s8 %v282
  %v284 = vlaneseq
  %v285 = vshrl.u32 %v284, 7
  %v286 = vsub.s32 %v283, %v285
  %v287 = vrot.slane %v279, %v286
  %v289 = vunpack.c.l.s4 1983009808
  %v290 = vunpack.c.0.s8 %v289
  %v291 = vlaneseq
  %v292 = vshrl.u32 %v291, 7
  %v293 = vsub.s32 %v290, %v292
  %v294 = vrot.slane %v280, %v293
  %v295 = vcombine.low %v272, %v274
  %v296 = vcombine.high %v272, %v274
  %v298 = vunpack.c.l.s4 1983009808
  %v299 = vunpack.c.0.s8 %v298
  %v300 = vlaneseq
  %v301 = vshrl.u32 %v300, 7
  %v302 = vsub.s32 %v299, %v301
  %v303 = vrot.slane %v295, %v302
  %v305 = vunpack.c.l.s4 1983009808
  %v306 = vunpack.c.0.s8 %v305
  %v307 = vlaneseq
  %v308 = vshrl.u32 %v307, 7
  %v309 = vsub.s32 %v306, %v308
  %v310 = vrot.slane %v296, %v309
  %v311 = vcombine.low %v275, %v277
  %v312 = vcombine.high %v275, %v277
  %v314 = vunpack.c.l.s4 1983009808
  %v315 = vunpack.c.0.s8 %v314
  %v316 = vlaneseq
  %v317 = vshrl.u32 %v316, 7
  %v318 = vsub.s32 %v315, %v317
  %v319 = vrot.slane %v311, %v318
  %v321 = vunpack.c.l.s4 1983009808
  %v322 = vunpack.c.0.s8 %v321
  %v323 = vlaneseq
  %v324 = vshrl.u32 %v323, 7
  %v325 = vsub.s32 %v322, %v324
  %v326 = vrot.slane %v312, %v325
  %v327 = vcombine.low %v276, %v278
  %v328 = vcombine.high %v276, %v278
  %v330 = vunpack.c.l.s4 1983009808
  %v331 = vunpack.c.0.s8 %v330
  %v332 = vlaneseq
  %v333 = vshrl.u32 %v332, 7
  %v334 = vsub.s32 %v331, %v333
  %v335 = vrot.slane %v327, %v334
  %v337 = vunpack.c.l.s4 1983009808
  %v338 = vunpack.c.0.s8 %v337
  %v339 = vlaneseq
  %v340 = vshrl.u32 %v339, 7
  %v341 = vsub.s32 %v338, %v340
  %v342 = vrot.slane %v328, %v341
  %v343 = vcombine.low %v287, %v303
  %v344 = vcombine.high %v287, %v303
  %v346 = vunpack.c.l.s4 1934713408
  %v347 = vunpack.c.0.s8 %v346
  %v348 = vlaneseq
  %v349 = vshrl.u32 %v348, 7
  %v350 = vsub.s32 %v347, %v349
  %v351 = vrot.slane %v343, %v350
  %v353 = vunpack.c.l.s4 1934713408
  %v354 = vunpack.c.0.s8 %v353
  %v355 = vlaneseq
  %v356 = vshrl.u32 %v355, 7
  %v357 = vsub.s32 %v354, %v356
  %v358 = vrot.slane %v344, %v357
  %v359 = vcombine.low %v294, %v310
  %v360 = vcombine.high %v294, %v310
  %v362 = vunpack.c.l.s4 1934713408
  %v363 = vunpack.c.0.s8 %v362
  %v364 = vlaneseq
  %v365 = vshrl.u32 %v364, 7
  %v366 = vsub.s32 %v363, %v365
  %v367 = vrot.slane %v359, %v366
  %v369 = vunpack.c.l.s4 1934713408
  %v370 = vunpack.c.0.s8 %v369
  %v371 = vlaneseq
  %v372 = vshrl.u32 %v371, 7
  %v373 = vsub.s32 %v370, %v372
  %v374 = vrot.slane %v360, %v373
  %v375 = vcombine.low %v319, %v335
  %v376 = vcombine.high %v319, %v335
  %v378 = vunpack.c.l.s4 1934713408
  %v379 = vunpack.c.0.s8 %v378
  %v380 = vlaneseq
  %v381 = vshrl.u32 %v380, 7
  %v382 = vsub.s32 %v379, %v381
  %v383 = vrot.slane %v375, %v382
  %v385 = vunpack.c.l.s4 1934713408
  %v386 = vunpack.c.0.s8 %v385
  %v387 = vlaneseq
  %v388 = vshrl.u32 %v387, 7
  %v389 = vsub.s32 %v386, %v388
  %v390 = vrot.slane %v376, %v389
  %v391 = vcombine.low %v326, %v342
  %v392 = vcombine.high %v326, %v342
  %v394 = vunpack.c.l.s4 1934713408
  %v395 = vunpack.c.0.s8 %v394
  %v396 = vlaneseq
  %v397 = vshrl.u32 %v396, 7
  %v398 = vsub.s32 %v395, %v397
  %v399 = vrot.slane %v391, %v398
  %v401 = vunpack.c.l.s4 1934713408
  %v402 = vunpack.c.0.s8 %v401
  %v403 = vlaneseq
  %v404 = vshrl.u32 %v403, 7
  %v405 = vsub.s32 %v402, %v404
  %v406 = vrot.slane %v392, %v405
  %v407 = vcombine.low %v351, %v383
  %v408 = vcombine.high %v351, %v383
  %v409 = vcombine.low %v358, %v390
  %v410 = vcombine.high %v358, %v390
  %v411 = vcombine.low %v367, %v399
  %v412 = vcombine.high %v367, %v399
  %v413 = vcombine.low %v374, %v406
  %v414 = vcombine.high %v374, %v406
  %415 = vst [vmem:[%s2] sm:$0xff] %v407
  %416 = vst [vmem:[%s2 + $0x8] sm:$0xff] %v408
  %417 = vst [vmem:[%s2 + $0x10] sm:$0xff] %v409
  %418 = vst [vmem:[%s2 + $0x18] sm:$0xff] %v410
  %419 = vst [vmem:[%s2 + $0x20] sm:$0xff] %v411
  %420 = vst [vmem:[%s2 + $0x28] sm:$0xff] %v412
  %421 = vst [vmem:[%s2 + $0x30] sm:$0xff] %v413
  %422 = vst [vmem:[%s2 + $0x38] sm:$0xff] %v414
  // Predicated region
  $region21: #{rnn_model_forward.4} parent=0 // pred_check
    _
  $region22: #{rnn_model_forward.4} parent=0 // pred_check_branch
    %424 = sbr.rel (0) target = $region24
  $region23: #{rnn_model_forward.4} parent=0 // pred_region
    _
  $region24: #{rnn_model_forward.4} parent=0 // pred_fallthru
    _
  // Predicated region
  $region25: #{rnn_model_forward.4} parent=0 // pred_check
    _
  $region26: #{rnn_model_forward.4} parent=0 // pred_check_branch
    %426 = sbr.rel (0) target = $region28
  $region27: #{rnn_model_forward.4} parent=0 // pred_region
    _
  $region28: #{rnn_model_forward.4} parent=0 // pred_fallthru
    _

</llo_original>
